<compile_context>
chip_gen: v6e
topology: v6e:2x2x1
jax: 0.10.0
libtpu: 0.0.40
codegen_flags: <defaults>
</compile_context>

<pallas_src>
import functools

import jax
import jax.numpy as jnp
from jax.experimental import pallas as pl
from jax.experimental.pallas import tpu as pltpu

LANE = 128


def _round_up(x, m):
    return ((x + m - 1) // m) * m


def _pick_divisor(n, cap, ok=None):
    """Largest divisor of n that is <= cap and passes `ok`; falls back to n (full extent)."""
    for d in range(min(cap, n), 0, -1):
        if n % d == 0 and (ok is None or ok(d)):
            return d
    return n


def _vmem_limit_bytes():
    """Generation-aware scoped-VMEM budget (v7x: 64 MiB physical, v5e/v6e: 128 MiB)."""
    cap = 64 * 1024 * 1024
    try:
        info = pltpu.get_tpu_info()
        cap = int(getattr(info, "vmem_capacity_bytes", cap))
    except Exception:
        pass
    return max(32 << 20, min(cap - (24 << 20), 104 << 20))


# ----------------------------- Pallas kernels ------------------------------

def _fused_conv_kernel(ph_ref, we_ref, be_ref, wd_ref, bd_ref, o_ref, *,
                       th, wo, cin, n_cls):
    """Fused encoder (3x3/s2 conv + bias + ReLU) + decoder (1x1 conv + bias).

    ph_ref : (1, 4, Hpp, Wpp, Cin)  stride-2 phase view of padded NHWC input (bf16)
    we_ref : (9*Cin, C_hid_p)       im2col-ordered encoder weights (bf16)
    be_ref : (1, C_hid_p)           encoder bias (f32)
    wd_ref : (C_hid_p, C_out_p)     decoder 1x1 weights (bf16)
    bd_ref : (1, C_out_p)           decoder bias (f32)
    o_ref  : (1, n_cls, th*wo)      channels-first decoder logits for this row tile (f32)
    """
    i = pl.program_id(1)
    row_base = pl.multiple_of(i * th, th)

    # Build the (th*wo, 9*Cin) im2col tile in VMEM: one MXU matmul with
    # K = 9*Cin replaces 9 K~=Cin dots + f32 VPU accumulation.
    taps = []
    for dy in range(3):
        for dx in range(3):
            phase = (dy % 2) * 2 + (dx % 2)
            taps.append(
                ph_ref[0, phase,
                       pl.ds(row_base + dy // 2, th),
                       pl.ds(dx // 2, wo), :].reshape(th * wo, cin))
    patch = jnp.concatenate(taps, axis=1)                       # (th*wo, 9*Cin) bf16

    feat = jnp.dot(patch, we_ref[...], preferred_element_type=jnp.float32)
    feat = jnp.maximum(feat + be_ref[...], 0.0)                 # bias + ReLU (f32)
    seg = jnp.dot(feat.astype(jnp.bfloat16), wd_ref[...],
                  preferred_element_type=jnp.float32) + bd_ref[...]
    # Channels-first store: only the n_cls useful channels hit HBM.  The
    # (th*wo, C_out_p) -> (C_out_p, th*wo) transpose runs on the otherwise-idle XLU.
    o_ref[0] = seg.T[:n_cls, :]


def _upsample_sigmoid_kernel(seg_ref, ah_ref, awT_ref, o_ref):
    """Separable bilinear resize of PB planes + sigmoid (bf16 MXU, f32 epilogue).

    seg_ref : (PB, h, w)            bf16 planes (resident across row tiles)
    ah_ref  : (TH_out, h)           bf16 row-interp tile
    awT_ref : (w, W_out)            bf16 col-interp matrix
    o_ref   : (PB, TH_out, W_out)   f32 probabilities
    """
    pb, h, w = seg_ref.shape
    th_out = ah_ref.shape[0]
    w_out = awT_ref.shape[1]
    ah = ah_ref[...]
    # Row interpolation: PB rank-2 dots (the RHS is a different plane each time,
    # so no MXU weights are wastefully re-pushed); stack along the cheap major axis.
    rows = [jnp.dot(ah, seg_ref[b], preferred_element_type=jnp.float32)
            for b in range(pb)]                                  # PB x (TH_out, w)
    tmp = jnp.concatenate(rows, axis=0).astype(jnp.bfloat16)     # (PB*TH_out, w)
    # Column interpolation as one big-M matmul: awT pushed once per grid step.
    out = jnp.dot(tmp, awT_ref[...], preferred_element_type=jnp.float32)
    o_ref[...] = jax.nn.sigmoid(out).reshape(pb, th_out, w_out)


# ------------------------------ Wrappers ------------------------------------

def fused_encoder_decoder(x, enc_w, enc_b, dec_w, dec_b, *, vmem_limit):
    """x: (N, C, H, W) f32 -> decoder logits (N, n_classes, H//2, W//2) f32."""
    N, C, H, W = x.shape
    assert H % 2 == 0 and W % 2 == 0
    C_hid = enc_w.shape[0]
    n_cls = dec_w.shape[0]
    Ho, Wo = H // 2, W // 2
    Hpp, Wpp = Ho + 1, Wo + 1

    # Host prep (fused into few HBM passes under jit): pad, NHWC, stride-2
    # space-to-depth phase view (1x data -- replaces a 9x im2col blow-up).
    # ph[n, py*2+px, r, c, :] = xpad[n, 2r+py, 2c+px, :]
    xp = jnp.pad(x, ((0, 0), (0, 0), (1, 1), (1, 1))).transpose(0, 2, 3, 1)
    ph = (xp.reshape(N, Hpp, 2, Wpp, 2, C)
            .transpose(0, 2, 4, 1, 3, 5)
            .reshape(N, 4, Hpp, Wpp, C)
            .astype(jnp.bfloat16))

    C_hid_p = _round_up(C_hid, LANE)
    C_out_p = _round_up(n_cls, LANE)
    K = 9 * C
    # Encoder weights in im2col order: row = (dy*3+dx)*Cin + ci.
    we = enc_w.transpose(2, 3, 1, 0).reshape(K, C_hid)
    we = jnp.pad(we, ((0, 0), (0, C_hid_p - C_hid))).astype(jnp.bfloat16)
    be = jnp.pad(enc_b, (0, C_hid_p - C_hid)).reshape(1, C_hid_p).astype(jnp.float32)
    wd = jnp.pad(dec_w.reshape(n_cls, C_hid).T,
                 ((0, C_hid_p - C_hid), (0, C_out_p - n_cls))).astype(jnp.bfloat16)
    bd = jnp.pad(dec_b, (0, C_out_p - n_cls)).reshape(1, C_out_p).astype(jnp.float32)

    # Output-row tile: divisor of Ho whose flattened tile is lane-dense (or full).
    TH = _pick_divisor(Ho, 16, ok=lambda d: (d * Wo) % LANE == 0 or d == Ho)
    grid = (N, Ho // TH)

    kernel = functools.partial(_fused_conv_kernel, th=TH, wo=Wo, cin=C, n_cls=n_cls)
    out = pl.pallas_call(
        kernel,
        grid=grid,
        in_specs=[
            # Full phase view of one image stays VMEM-resident across row tiles.
            # TODO(synk): for very large images, row-tile this input (1-row halo)
            # via manual DMA double-buffering instead of full residency.
            pl.BlockSpec((1, 4, Hpp, Wpp, C), lambda n, i: (n, 0, 0, 0, 0)),
            pl.BlockSpec((K, C_hid_p), lambda n, i: (0, 0)),
            pl.BlockSpec((1, C_hid_p), lambda n, i: (0, 0)),
            pl.BlockSpec((C_hid_p, C_out_p), lambda n, i: (0, 0)),
            pl.BlockSpec((1, C_out_p), lambda n, i: (0, 0)),
        ],
        out_specs=pl.BlockSpec((1, n_cls, TH * Wo), lambda n, i: (n, 0, i)),
        out_shape=jax.ShapeDtypeStruct((N, n_cls, Ho * Wo), jnp.float32),
        compiler_params=pltpu.CompilerParams(
            dimension_semantics=("parallel", "parallel"),
            vmem_limit_bytes=vmem_limit,
        ),
    )(ph, we, be, wd, bd)

    # Free (contiguous) split of the last dim -- no relayout pass.
    return out.reshape(N, n_cls, Ho, Wo)


def _bilinear_matrix(out_size, in_size):
    """PyTorch F.interpolate(mode='bilinear', align_corners=False) weights."""
    scale = in_size / out_size
    i = jnp.arange(out_size, dtype=jnp.float32)
    src = jnp.clip((i + 0.5) * scale - 0.5, 0.0, in_size - 1)
    i0 = jnp.floor(src).astype(jnp.int32)
    i1 = jnp.minimum(i0 + 1, in_size - 1)
    frac = src - i0.astype(jnp.float32)
    return (jax.nn.one_hot(i0, in_size, dtype=jnp.float32) * (1.0 - frac)[:, None]
            + jax.nn.one_hot(i1, in_size, dtype=jnp.float32) * frac[:, None])


def upsample_bilinear_sigmoid(seg, H_out, W_out, *, vmem_limit):
    """seg: (N, C, h, w) -> sigmoid(bilinear_resize(seg, (H_out, W_out))) in f32."""
    N, C, h, w = seg.shape
    P = N * C
    ah = _bilinear_matrix(H_out, h).astype(jnp.bfloat16)      # (H_out, h)
    awT = _bilinear_matrix(W_out, w).T.astype(jnp.bfloat16)   # (w, W_out)
    planes = seg.reshape(P, h, w).astype(jnp.bfloat16)        # contiguous reshape + cast

    PB = _pick_divisor(P, 8)                                  # planes per grid step
    TH_out = _pick_divisor(H_out, 128, ok=lambda d: d % 8 == 0 or d == H_out)

    out = pl.pallas_call(
        _upsample_sigmoid_kernel,
        grid=(P // PB, H_out // TH_out),                      # row tiles innermost
        in_specs=[
            pl.BlockSpec((PB, h, w), lambda p, r: (p, 0, 0)),     # resident across row tiles
            pl.BlockSpec((TH_out, h), lambda p, r: (r, 0)),
            pl.BlockSpec((w, W_out), lambda p, r: (0, 0)),
        ],
        out_specs=pl.BlockSpec((PB, TH_out, W_out), lambda p, r: (p, r, 0)),
        out_shape=jax.ShapeDtypeStruct((P, H_out, W_out), jnp.float32),
        compiler_params=pltpu.CompilerParams(
            dimension_semantics=("parallel", "parallel"),
            vmem_limit_bytes=vmem_limit,
        ),
    )(planes, ah, awT)
    return out.reshape(N, C, H_out, W_out)


# --------------------------- BaseModel forward -------------------------------
# Concrete stand-ins for the abstract encoder / decoder / activate:
#   encoder : 3x3 conv stride-2 pad-1 + ReLU  (C_in -> C_hid, H/2 x W/2)
#   decoder : 1x1 conv                        (C_hid -> num_classes)
#   activate: sigmoid (fused into the bilinear-upsample kernel)
# TODO(synk): deep-supervision branch (use_deep_supervision=True) needs a
# multi-stage encoder feature list + extra decoder; not instantiated here.

def base_model_forward(x, params):
    vmem_limit = _vmem_limit_bytes()
    seg_out = fused_encoder_decoder(x, params["enc_w"], params["enc_b"],
                                    params["dec_w"], params["dec_b"],
                                    vmem_limit=vmem_limit)
    H, W = x.shape[-2:]
    return upsample_bilinear_sigmoid(seg_out, H, W, vmem_limit=vmem_limit)


def _reference_forward(x, params):
    """Pure-JAX f32 reference (PyTorch semantics) for a tolerance check."""
    feat = jax.lax.conv_general_dilated(
        x, params["enc_w"], window_strides=(2, 2), padding=((1, 1), (1, 1)),
        dimension_numbers=("NCHW", "OIHW", "NCHW"))
    feat = jax.nn.relu(feat + params["enc_b"][None, :, None, None])
    seg = jax.lax.conv_general_dilated(
        feat, params["dec_w"], window_strides=(1, 1), padding="VALID",
        dimension_numbers=("NCHW", "OIHW", "NCHW"))
    seg = seg + params["dec_b"][None, :, None, None]
    H, W = x.shape[-2:]
    h, w = seg.shape[-2:]
    ah = _bilinear_matrix(H, h)
    aw = _bilinear_matrix(W, w)
    up = jnp.einsum("Oh,nchw,Ww->ncOW", ah, seg, aw)
    return jax.nn.sigmoid(up)


def init_params(key, c_in, c_hid, n_classes):
    k1, k2, k3, k4 = jax.random.split(key, 4)
    return {
        "enc_w": 0.1 * jax.random.normal(k1, (c_hid, c_in, 3, 3), jnp.float32),
        "enc_b": 0.1 * jax.random.normal(k2, (c_hid,), jnp.float32),
        "dec_w": 0.1 * jax.random.normal(k3, (n_classes, c_hid, 1, 1), jnp.float32),
        "dec_b": 0.1 * jax.random.normal(k4, (n_classes,), jnp.float32),
    }


if __name__ == "__main__":
    key = jax.random.PRNGKey(0)
    kx, kp = jax.random.split(key)
    N, C, H, W = 2, 4, 16, 16
    C_hid, n_classes = 8, 2
    x = jax.random.normal(kx, (N, C, H, W), jnp.float32)
    params = init_params(kp, C, C_hid, n_classes)

    fwd = jax.jit(base_model_forward)
    out = jax.block_until_ready(fwd(x, params))

    assert out.shape == (N, n_classes, H, W), out.shape
    assert bool(jnp.all(jnp.isfinite(out))) and bool(jnp.all((out >= 0) & (out <= 1)))
    # bf16 MXU operands => ~1e-2 tolerance vs the f32 reference.
    ref = _reference_forward(x, params)
    assert bool(jnp.allclose(out, ref, atol=3e-2, rtol=3e-2)), float(jnp.max(jnp.abs(out - ref)))
    print("KERNEL_OK")
</pallas_src>

<mosaic_0001>
module attributes {stable_mosaic.version = 11 : i64} {
  func.func @_fused_conv_kernel(%arg0: i32, %arg1: i32, %arg2: memref<1x4x9x9x4xbf16, #tpu.memory_space<vmem>>, %arg3: memref<36x128xbf16, #tpu.memory_space<vmem>>, %arg4: memref<1x128xf32, #tpu.memory_space<vmem>>, %arg5: memref<128x128xbf16, #tpu.memory_space<vmem>>, %arg6: memref<1x128xf32, #tpu.memory_space<vmem>>, %arg7: memref<1x2x64xf32, #tpu.memory_space<vmem>>) attributes {dimension_semantics = [#tpu.dimension_semantics<parallel>, #tpu.dimension_semantics<parallel>], iteration_bounds = array<i64: 2, 1>, scalar_prefetch = 0 : i64, scratch_operands = 0 : i64, tpu.core_type = #tpu.core_type<tc>, window_params = [{transform_indices = @transform_0, window_bounds = array<i64: 1, 4, 9, 9, 4>}, {pipeline_mode = #tpu.pipeline_mode<synchronous>, transform_indices = @transform_1, window_bounds = array<i64: 36, 128>}, {pipeline_mode = #tpu.pipeline_mode<synchronous>, transform_indices = @transform_2, window_bounds = array<i64: 1, 128>}, {pipeline_mode = #tpu.pipeline_mode<synchronous>, transform_indices = @transform_3, window_bounds = array<i64: 128, 128>}, {pipeline_mode = #tpu.pipeline_mode<synchronous>, transform_indices = @transform_4, window_bounds = array<i64: 1, 128>}, {transform_indices = @transform_5, window_bounds = array<i64: 1, 2, 64>}]} {
    %c8_i32 = arith.constant 8 : i32
    %0 = arith.muli %arg1, %c8_i32 : i32
    %1 = tpu.assume_multiple %0, 8 : i32
    %c0_i32 = arith.constant 0 : i32
    %2 = arith.addi %1, %c0_i32 : i32
    %c0 = arith.constant 0 : index
    %c0_0 = arith.constant 0 : index
    %3 = arith.index_cast %2 : i32 to index
    %c0_1 = arith.constant 0 : index
    %c0_2 = arith.constant 0 : index
    %4 = vector.load %arg2[%c0, %c0_0, %3, %c0_1, %c0_2] : memref<1x4x9x9x4xbf16, #tpu.memory_space<vmem>>, vector<1x1x8x8x4xbf16>
    %5 = vector.shape_cast %4 : vector<1x1x8x8x4xbf16> to vector<8x8x4xbf16>
    %6 = vector.shape_cast %5 : vector<8x8x4xbf16> to vector<64x4xbf16>
    %c0_i32_3 = arith.constant 0 : i32
    %7 = arith.addi %1, %c0_i32_3 : i32
    %c0_4 = arith.constant 0 : index
    %c1 = arith.constant 1 : index
    %8 = arith.index_cast %7 : i32 to index
    %c0_5 = arith.constant 0 : index
    %c0_6 = arith.constant 0 : index
    %9 = vector.load %arg2[%c0_4, %c1, %8, %c0_5, %c0_6] : memref<1x4x9x9x4xbf16, #tpu.memory_space<vmem>>, vector<1x1x8x8x4xbf16>
    %10 = vector.shape_cast %9 : vector<1x1x8x8x4xbf16> to vector<8x8x4xbf16>
    %11 = vector.shape_cast %10 : vector<8x8x4xbf16> to vector<64x4xbf16>
    %c0_i32_7 = arith.constant 0 : i32
    %12 = arith.addi %1, %c0_i32_7 : i32
    %c0_8 = arith.constant 0 : index
    %c0_9 = arith.constant 0 : index
    %13 = arith.index_cast %12 : i32 to index
    %c1_10 = arith.constant 1 : index
    %c0_11 = arith.constant 0 : index
    %14 = vector.load %arg2[%c0_8, %c0_9, %13, %c1_10, %c0_11] : memref<1x4x9x9x4xbf16, #tpu.memory_space<vmem>>, vector<1x1x8x8x4xbf16>
    %15 = vector.shape_cast %14 : vector<1x1x8x8x4xbf16> to vector<8x8x4xbf16>
    %16 = vector.shape_cast %15 : vector<8x8x4xbf16> to vector<64x4xbf16>
    %c0_i32_12 = arith.constant 0 : i32
    %17 = arith.addi %1, %c0_i32_12 : i32
    %c0_13 = arith.constant 0 : index
    %c2 = arith.constant 2 : index
    %18 = arith.index_cast %17 : i32 to index
    %c0_14 = arith.constant 0 : index
    %c0_15 = arith.constant 0 : index
    %19 = vector.load %arg2[%c0_13, %c2, %18, %c0_14, %c0_15] : memref<1x4x9x9x4xbf16, #tpu.memory_space<vmem>>, vector<1x1x8x8x4xbf16>
    %20 = vector.shape_cast %19 : vector<1x1x8x8x4xbf16> to vector<8x8x4xbf16>
    %21 = vector.shape_cast %20 : vector<8x8x4xbf16> to vector<64x4xbf16>
    %c0_i32_16 = arith.constant 0 : i32
    %22 = arith.addi %1, %c0_i32_16 : i32
    %c0_17 = arith.constant 0 : index
    %c3 = arith.constant 3 : index
    %23 = arith.index_cast %22 : i32 to index
    %c0_18 = arith.constant 0 : index
    %c0_19 = arith.constant 0 : index
    %24 = vector.load %arg2[%c0_17, %c3, %23, %c0_18, %c0_19] : memref<1x4x9x9x4xbf16, #tpu.memory_space<vmem>>, vector<1x1x8x8x4xbf16>
    %25 = vector.shape_cast %24 : vector<1x1x8x8x4xbf16> to vector<8x8x4xbf16>
    %26 = vector.shape_cast %25 : vector<8x8x4xbf16> to vector<64x4xbf16>
    %c0_i32_20 = arith.constant 0 : i32
    %27 = arith.addi %1, %c0_i32_20 : i32
    %c0_21 = arith.constant 0 : index
    %c2_22 = arith.constant 2 : index
    %28 = arith.index_cast %27 : i32 to index
    %c1_23 = arith.constant 1 : index
    %c0_24 = arith.constant 0 : index
    %29 = vector.load %arg2[%c0_21, %c2_22, %28, %c1_23, %c0_24] : memref<1x4x9x9x4xbf16, #tpu.memory_space<vmem>>, vector<1x1x8x8x4xbf16>
    %30 = vector.shape_cast %29 : vector<1x1x8x8x4xbf16> to vector<8x8x4xbf16>
    %31 = vector.shape_cast %30 : vector<8x8x4xbf16> to vector<64x4xbf16>
    %c1_i32 = arith.constant 1 : i32
    %32 = arith.addi %1, %c1_i32 : i32
    %c0_25 = arith.constant 0 : index
    %c0_26 = arith.constant 0 : index
    %33 = arith.index_cast %32 : i32 to index
    %c0_27 = arith.constant 0 : index
    %c0_28 = arith.constant 0 : index
    %34 = vector.load %arg2[%c0_25, %c0_26, %33, %c0_27, %c0_28] : memref<1x4x9x9x4xbf16, #tpu.memory_space<vmem>>, vector<1x1x8x8x4xbf16>
    %35 = vector.shape_cast %34 : vector<1x1x8x8x4xbf16> to vector<8x8x4xbf16>
    %36 = vector.shape_cast %35 : vector<8x8x4xbf16> to vector<64x4xbf16>
    %c1_i32_29 = arith.constant 1 : i32
    %37 = arith.addi %1, %c1_i32_29 : i32
    %c0_30 = arith.constant 0 : index
    %c1_31 = arith.constant 1 : index
    %38 = arith.index_cast %37 : i32 to index
    %c0_32 = arith.constant 0 : index
    %c0_33 = arith.constant 0 : index
    %39 = vector.load %arg2[%c0_30, %c1_31, %38, %c0_32, %c0_33] : memref<1x4x9x9x4xbf16, #tpu.memory_space<vmem>>, vector<1x1x8x8x4xbf16>
    %40 = vector.shape_cast %39 : vector<1x1x8x8x4xbf16> to vector<8x8x4xbf16>
    %41 = vector.shape_cast %40 : vector<8x8x4xbf16> to vector<64x4xbf16>
    %c1_i32_34 = arith.constant 1 : i32
    %42 = arith.addi %1, %c1_i32_34 : i32
    %c0_35 = arith.constant 0 : index
    %c0_36 = arith.constant 0 : index
    %43 = arith.index_cast %42 : i32 to index
    %c1_37 = arith.constant 1 : index
    %c0_38 = arith.constant 0 : index
    %44 = vector.load %arg2[%c0_35, %c0_36, %43, %c1_37, %c0_38] : memref<1x4x9x9x4xbf16, #tpu.memory_space<vmem>>, vector<1x1x8x8x4xbf16>
    %45 = vector.shape_cast %44 : vector<1x1x8x8x4xbf16> to vector<8x8x4xbf16>
    %46 = vector.shape_cast %45 : vector<8x8x4xbf16> to vector<64x4xbf16>
    %47 = tpu.concatenate %6, %11, %16, %21, %26, %31, %36, %41, %46 in 1 : vector<64x4xbf16>, vector<64x4xbf16>, vector<64x4xbf16>, vector<64x4xbf16>, vector<64x4xbf16>, vector<64x4xbf16>, vector<64x4xbf16>, vector<64x4xbf16>, vector<64x4xbf16> -> vector<64x36xbf16>
    %c0_39 = arith.constant 0 : index
    %c0_40 = arith.constant 0 : index
    %48 = vector.load %arg3[%c0_39, %c0_40] : memref<36x128xbf16, #tpu.memory_space<vmem>>, vector<36x128xbf16>
    %cst = arith.constant dense<0.000000e+00> : vector<64x128xf32>
    %49 = tpu.matmul %47, %48, %cst {dimension_numbers = #tpu.dot_dimension_numbers<[1], [0], [0], [1], [0, 0, 1, 1], [], []>} : vector<64x36xbf16>, vector<36x128xbf16>, vector<64x128xf32> -> vector<64x128xf32>
    %c0_41 = arith.constant 0 : index
    %c0_42 = arith.constant 0 : index
    %50 = vector.load %arg4[%c0_41, %c0_42] : memref<1x128xf32, #tpu.memory_space<vmem>>, vector<1x128xf32>
    %51 = vector.broadcast %50 : vector<1x128xf32> to vector<64x128xf32>
    %52 = arith.addf %49, %51 : vector<64x128xf32>
    %cst_43 = arith.constant 0.000000e+00 : f32
    %53 = vector.broadcast %cst_43 : f32 to vector<64x128xf32>
    %54 = arith.maximumf %52, %53 : vector<64x128xf32>
    %55 = arith.truncf %54 : vector<64x128xf32> to vector<64x128xbf16>
    %c0_44 = arith.constant 0 : index
    %c0_45 = arith.constant 0 : index
    %56 = vector.load %arg5[%c0_44, %c0_45] : memref<128x128xbf16, #tpu.memory_space<vmem>>, vector<128x128xbf16>
    %cst_46 = arith.constant dense<0.000000e+00> : vector<64x128xf32>
    %57 = tpu.matmul %55, %56, %cst_46 {dimension_numbers = #tpu.dot_dimension_numbers<[1], [0], [0], [1], [0, 0, 1, 1], [], []>} : vector<64x128xbf16>, vector<128x128xbf16>, vector<64x128xf32> -> vector<64x128xf32>
    %c0_47 = arith.constant 0 : index
    %c0_48 = arith.constant 0 : index
    %58 = vector.load %arg6[%c0_47, %c0_48] : memref<1x128xf32, #tpu.memory_space<vmem>>, vector<1x128xf32>
    %59 = vector.broadcast %58 : vector<1x128xf32> to vector<64x128xf32>
    %60 = arith.addf %57, %59 : vector<64x128xf32>
    %61 = tpu.transpose %60, [1, 0] : vector<64x128xf32> -> vector<128x64xf32>
    %62 = vector.extract_strided_slice %61 {offsets = [0, 0], sizes = [2, 64], strides = [1, 1]} : vector<128x64xf32> to vector<2x64xf32>
    %c0_49 = arith.constant 0 : index
    %c0_50 = arith.constant 0 : index
    %c0_51 = arith.constant 0 : index
    %63 = vector.load %arg7[%c0_49, %c0_50, %c0_51] : memref<1x2x64xf32, #tpu.memory_space<vmem>>, vector<1x2x64xf32>
    %64 = vector.shape_cast %63 : vector<1x2x64xf32> to vector<2x64xf32>
    %65 = vector.shape_cast %62 : vector<2x64xf32> to vector<1x2x64xf32>
    tpu.vector_store %arg7[%c0_49, %c0_50, %c0_51], %65 {strides = array<i32>} : memref<1x2x64xf32, #tpu.memory_space<vmem>>, vector<1x2x64xf32>,
    return
  }
  func.func @transform_0(%arg0: i32, %arg1: i32) -> (i32, i32, i32, i32, i32) {
    %c0_i32 = arith.constant 0 : i32
    %c0_i32_0 = arith.constant 0 : i32
    %c0_i32_1 = arith.constant 0 : i32
    %c0_i32_2 = arith.constant 0 : i32
    %c0_i32_3 = arith.constant 0 : i32
    return %arg0, %c0_i32, %c0_i32_0, %c0_i32_1, %c0_i32_2 : i32, i32, i32, i32, i32
  }
  func.func @transform_1(%arg0: i32, %arg1: i32) -> (i32, i32) {
    %c0_i32 = arith.constant 0 : i32
    %c0_i32_0 = arith.constant 0 : i32
    %c0_i32_1 = arith.constant 0 : i32
    return %c0_i32, %c0_i32_0 : i32, i32
  }
  func.func @transform_2(%arg0: i32, %arg1: i32) -> (i32, i32) {
    %c0_i32 = arith.constant 0 : i32
    %c0_i32_0 = arith.constant 0 : i32
    %c0_i32_1 = arith.constant 0 : i32
    return %c0_i32, %c0_i32_0 : i32, i32
  }
  func.func @transform_3(%arg0: i32, %arg1: i32) -> (i32, i32) {
    %c0_i32 = arith.constant 0 : i32
    %c0_i32_0 = arith.constant 0 : i32
    %c0_i32_1 = arith.constant 0 : i32
    return %c0_i32, %c0_i32_0 : i32, i32
  }
  func.func @transform_4(%arg0: i32, %arg1: i32) -> (i32, i32) {
    %c0_i32 = arith.constant 0 : i32
    %c0_i32_0 = arith.constant 0 : i32
    %c0_i32_1 = arith.constant 0 : i32
    return %c0_i32, %c0_i32_0 : i32, i32
  }
  func.func @transform_5(%arg0: i32, %arg1: i32) -> (i32, i32, i32) {
    %c0_i32 = arith.constant 0 : i32
    %c0_i32_0 = arith.constant 0 : i32
    return %arg0, %c0_i32, %arg1 : i32, i32, i32
  }
}

module attributes {stable_mosaic.version = 11 : i64} {
  func.func @_upsample_sigmoid_kernel(%arg0: i32, %arg1: i32, %arg2: memref<4x8x8xbf16, #tpu.memory_space<vmem>>, %arg3: memref<16x8xbf16, #tpu.memory_space<vmem>>, %arg4: memref<8x16xbf16, #tpu.memory_space<vmem>>, %arg5: memref<4x16x16xf32, #tpu.memory_space<vmem>>) attributes {dimension_semantics = [#tpu.dimension_semantics<parallel>, #tpu.dimension_semantics<parallel>], iteration_bounds = array<i64: 1, 1>, scalar_prefetch = 0 : i64, scratch_operands = 0 : i64, tpu.core_type = #tpu.core_type<tc>, window_params = [{transform_indices = @transform_0, window_bounds = array<i64: 4, 8, 8>}, {transform_indices = @transform_1, window_bounds = array<i64: 16, 8>}, {pipeline_mode = #tpu.pipeline_mode<synchronous>, transform_indices = @transform_2, window_bounds = array<i64: 8, 16>}, {transform_indices = @transform_3, window_bounds = array<i64: 4, 16, 16>}]} {
    %c0 = arith.constant 0 : index
    %c0_0 = arith.constant 0 : index
    %0 = vector.load %arg3[%c0, %c0_0] : memref<16x8xbf16, #tpu.memory_space<vmem>>, vector<16x8xbf16>
    %c0_1 = arith.constant 0 : index
    %c0_2 = arith.constant 0 : index
    %c0_3 = arith.constant 0 : index
    %1 = vector.load %arg2[%c0_1, %c0_2, %c0_3] : memref<4x8x8xbf16, #tpu.memory_space<vmem>>, vector<1x8x8xbf16>
    %2 = vector.shape_cast %1 : vector<1x8x8xbf16> to vector<8x8xbf16>
    %cst = arith.constant dense<0.000000e+00> : vector<16x8xf32>
    %3 = tpu.matmul %0, %2, %cst {dimension_numbers = #tpu.dot_dimension_numbers<[1], [0], [0], [1], [0, 0, 1, 1], [], []>} : vector<16x8xbf16>, vector<8x8xbf16>, vector<16x8xf32> -> vector<16x8xf32>
    %c1 = arith.constant 1 : index
    %c0_4 = arith.constant 0 : index
    %c0_5 = arith.constant 0 : index
    %4 = vector.load %arg2[%c1, %c0_4, %c0_5] : memref<4x8x8xbf16, #tpu.memory_space<vmem>>, vector<1x8x8xbf16>
    %5 = vector.shape_cast %4 : vector<1x8x8xbf16> to vector<8x8xbf16>
    %cst_6 = arith.constant dense<0.000000e+00> : vector<16x8xf32>
    %6 = tpu.matmul %0, %5, %cst_6 {dimension_numbers = #tpu.dot_dimension_numbers<[1], [0], [0], [1], [0, 0, 1, 1], [], []>} : vector<16x8xbf16>, vector<8x8xbf16>, vector<16x8xf32> -> vector<16x8xf32>
    %c2 = arith.constant 2 : index
    %c0_7 = arith.constant 0 : index
    %c0_8 = arith.constant 0 : index
    %7 = vector.load %arg2[%c2, %c0_7, %c0_8] : memref<4x8x8xbf16, #tpu.memory_space<vmem>>, vector<1x8x8xbf16>
    %8 = vector.shape_cast %7 : vector<1x8x8xbf16> to vector<8x8xbf16>
    %cst_9 = arith.constant dense<0.000000e+00> : vector<16x8xf32>
    %9 = tpu.matmul %0, %8, %cst_9 {dimension_numbers = #tpu.dot_dimension_numbers<[1], [0], [0], [1], [0, 0, 1, 1], [], []>} : vector<16x8xbf16>, vector<8x8xbf16>, vector<16x8xf32> -> vector<16x8xf32>
    %c3 = arith.constant 3 : index
    %c0_10 = arith.constant 0 : index
    %c0_11 = arith.constant 0 : index
    %10 = vector.load %arg2[%c3, %c0_10, %c0_11] : memref<4x8x8xbf16, #tpu.memory_space<vmem>>, vector<1x8x8xbf16>
    %11 = vector.shape_cast %10 : vector<1x8x8xbf16> to vector<8x8xbf16>
    %cst_12 = arith.constant dense<0.000000e+00> : vector<16x8xf32>
    %12 = tpu.matmul %0, %11, %cst_12 {dimension_numbers = #tpu.dot_dimension_numbers<[1], [0], [0], [1], [0, 0, 1, 1], [], []>} : vector<16x8xbf16>, vector<8x8xbf16>, vector<16x8xf32> -> vector<16x8xf32>
    %13 = tpu.concatenate %3, %6, %9, %12 in 0 : vector<16x8xf32>, vector<16x8xf32>, vector<16x8xf32>, vector<16x8xf32> -> vector<64x8xf32>
    %14 = arith.truncf %13 : vector<64x8xf32> to vector<64x8xbf16>
    %c0_13 = arith.constant 0 : index
    %c0_14 = arith.constant 0 : index
    %15 = vector.load %arg4[%c0_13, %c0_14] : memref<8x16xbf16, #tpu.memory_space<vmem>>, vector<8x16xbf16>
    %cst_15 = arith.constant dense<0.000000e+00> : vector<64x16xf32>
    %16 = tpu.matmul %14, %15, %cst_15 {dimension_numbers = #tpu.dot_dimension_numbers<[1], [0], [0], [1], [0, 0, 1, 1], [], []>} : vector<64x8xbf16>, vector<8x16xbf16>, vector<64x16xf32> -> vector<64x16xf32>
    %17 = arith.negf %16 : vector<64x16xf32>
    %18 = math.exp %17 : vector<64x16xf32>
    %cst_16 = arith.constant 1.000000e+00 : f32
    %19 = vector.broadcast %cst_16 : f32 to vector<64x16xf32>
    %20 = arith.addf %19, %18 : vector<64x16xf32>
    %21 = arith.divf %19, %20 : vector<64x16xf32>
    %22 = vector.shape_cast %21 : vector<64x16xf32> to vector<4x16x16xf32>
    %c0_17 = arith.constant 0 : index
    %c0_18 = arith.constant 0 : index
    %c0_19 = arith.constant 0 : index
    %23 = vector.load %arg5[%c0_17, %c0_18, %c0_19] : memref<4x16x16xf32, #tpu.memory_space<vmem>>, vector<4x16x16xf32>
    tpu.vector_store %arg5[%c0_17, %c0_18, %c0_19], %22 {strides = array<i32>} : memref<4x16x16xf32, #tpu.memory_space<vmem>>, vector<4x16x16xf32>,
    return
  }
  func.func @transform_0(%arg0: i32, %arg1: i32) -> (i32, i32, i32) {
    %c0_i32 = arith.constant 0 : i32
    %c0_i32_0 = arith.constant 0 : i32
    %c0_i32_1 = arith.constant 0 : i32
    return %arg0, %c0_i32, %c0_i32_0 : i32, i32, i32
  }
  func.func @transform_1(%arg0: i32, %arg1: i32) -> (i32, i32) {
    %c0_i32 = arith.constant 0 : i32
    %c0_i32_0 = arith.constant 0 : i32
    return %arg1, %c0_i32 : i32, i32
  }
  func.func @transform_2(%arg0: i32, %arg1: i32) -> (i32, i32) {
    %c0_i32 = arith.constant 0 : i32
    %c0_i32_0 = arith.constant 0 : i32
    %c0_i32_1 = arith.constant 0 : i32
    return %c0_i32, %c0_i32_0 : i32, i32
  }
  func.func @transform_3(%arg0: i32, %arg1: i32) -> (i32, i32, i32) {
    %c0_i32 = arith.constant 0 : i32
    %c0_i32_0 = arith.constant 0 : i32
    return %arg0, %arg1, %c0_i32 : i32, i32, i32
  }
}

</mosaic_0001>

<llo_original>
// kernel: base_model_forward.3
$region0: #{base_model_forward.3}
  #allocation0 [shape = 'u32[]', space=smem, size = 0x4, offset = 0x4, fixed_abs, tag = 'smem constant byte address 0x4 - core index']
  #allocation1 [shape = 'u32[144,128]{1,0:T(1,128)}', space=vmem, size = 0x12000, scoped, tag = 'internal scratch']
  %s0 = inlined_call_operand.vmem [shape: bf16[4,8,8], index: 0, kind: input, shape index: {}]
  %s1 = inlined_call_operand.vmem [shape: bf16[16,8], index: 1, kind: input, shape index: {}]
  %s2 = inlined_call_operand.vmem [shape: bf16[8,16], index: 2, kind: input, shape index: {}]
  %s3 = inlined_call_operand.hbm [shape: f32[4,16,16], index: 3, kind: output, shape index: {}]
  %s4 = sld [smem:[#allocation0]]
  $region22: #{base_model_forward.3} parent=0
    _
  %s6 = ssub.s32 1, %s4
  %s7 = scalar_select 0, %s6, %s4
  $region1: #{base_model_forward.3} parent=0
    #allocation2 [shape = 'u8[32768]{0}', space=vmem, size = 0x8000, scoped, tag = 'output window, operand 0, single buffered']
    #allocation3 [shape = 's32[1]{0}', space=sflag, size = 0x4, scoped, tag = 'scoped memory for base_model_forward.3']
    %8 = vsyncpa [#allocation3], 0
    // Predicated region
    $region2: #{base_model_forward.3} parent=1 // pred_check
      _
    $region3: #{base_model_forward.3} parent=1 // pred_check_branch
      %10 = sbr.rel (0) target = $region5
    $region4: #{base_model_forward.3} parent=1 // pred_region
      _
    $region5: #{base_model_forward.3} parent=1 // pred_fallthru
      _
    // Predicated region
    $region6: #{base_model_forward.3} parent=1 // pred_check
      _
    $region7: #{base_model_forward.3} parent=1 // pred_check_branch
      %12 = sbr.rel (0) target = $region9
    $region8: #{base_model_forward.3} parent=1 // pred_region
      _
    $region9: #{base_model_forward.3} parent=1 // pred_fallthru
      _
    // Predicated region
    $region10: #{base_model_forward.3} parent=1 // pred_check
      _
    $region11: #{base_model_forward.3} parent=1 // pred_check_branch
      %14 = sbr.rel (0) target = $region13
    $region12: #{base_model_forward.3} parent=1 // pred_region
      _
    $region13: #{base_model_forward.3} parent=1 // pred_fallthru
      _
    %v16 = vld [vmem:[%s1] sm:$0xf]
    %v17 = vld [vmem:[%s1 + $0x4] sm:$0xf]
    %v18 = vld [vmem:[%s0] sm:$0xf]
    %v21 = vunpack.c.l.b16 %v16
    %v22 = vunpack.c.l.b16 %v17
    %v23 = vpack.c.b16 %v22, %v21
    %vm24 = vcmask 64512
    %v26 = vsel %vm24, %v23, 0
    %vm28 = vcmask 1043456
    %v30 = vsel %vm28, %v18, 0
    %32 = vmatprep.subr.bf16.mxu0 0
    %33 = vmatpush1.bf16.msra.mxu0 0
    %34 = vmatprep.subr.bf16.mxu0 0
    %35 = vmatpush1.bf16.msra.mxu0 0
    %36 = vmatprep.subr.bf16.mxu0 0
    %37 = vmatpush1.bf16.msra.mxu0 0
    %38 = vmatprep.subr.bf16.mxu0 0
    %39 = vmatpush1.bf16.msra.mxu0 0
    %40 = vmatprep.subr.bf16.mxu0 0
    %41 = vmatpush1.bf16.msra.mxu0 0
    %42 = vmatprep.subr.bf16.mxu0 0
    %43 = vmatpush1.bf16.msra.mxu0 0
    %44 = vmatprep.subr.bf16.mxu0 0
    %45 = vmatpush1.bf16.msra.mxu0 0
    %46 = vmatprep.subr.bf16.mxu0 0
    %47 = vmatpush1.bf16.msra.mxu0 %v30
    %48 = vmatprep.subr.bf16.mxu0 0
    %49 = vmatpush2.bf16.msra.mxu0 0
    %50 = vmatprep.subr.bf16.mxu0 0
    %51 = vmatpush2.bf16.msra.mxu0 0
    %52 = vmatprep.subr.bf16.mxu0 0
    %53 = vmatpush2.bf16.msra.mxu0 0
    %54 = vmatprep.subr.bf16.mxu0 0
    %55 = vmatpush2.bf16.msra.mxu0 0
    %56 = vmatprep.subr.bf16.mxu0 0
    %57 = vmatpush2.bf16.msra.mxu0 0
    %58 = vmatprep.subr.bf16.mxu0 0
    %59 = vmatpush2.bf16.msra.mxu0 0
    %60 = vmatprep.subr.bf16.mxu0 0
    %61 = vmatpush2.bf16.msra.mxu0 0
    %62 = vmatprep.subr.bf16.mxu0 0
    %63 = vmatpush2.bf16.msra.mxu0 0
    %64 = vmatprep.mubr.bf16.mxu0 0
    %65 = vmatmul.mubr.bf16.gmra.mxu0 %v26
    %v66 = vpop.f32.mrf.mxu0
    %v67 = vadd.f32 0.0, %v66
    %v68 = vpop.f32.mrf.mxu0
    %v69 = vpop.f32.mrf.mxu0
    %v70 = vadd.f32 0.0, %v69
    %v71 = vpop.f32.mrf.mxu0
    %72 = vdwg.mxu0
    %s73 = scalar_lea.vmem %s0, 4
    %v74 = vld [vmem:[%s73] sm:$0xf]
    %v76 = vsel %vm28, %v74, 0
    %78 = vmatprep.subr.bf16.mxu0 0
    %79 = vmatpush1.bf16.msra.mxu0 0
    %80 = vmatprep.subr.bf16.mxu0 0
    %81 = vmatpush1.bf16.msra.mxu0 0
    %82 = vmatprep.subr.bf16.mxu0 0
    %83 = vmatpush1.bf16.msra.mxu0 0
    %84 = vmatprep.subr.bf16.mxu0 0
    %85 = vmatpush1.bf16.msra.mxu0 0
    %86 = vmatprep.subr.bf16.mxu0 0
    %87 = vmatpush1.bf16.msra.mxu0 0
    %88 = vmatprep.subr.bf16.mxu0 0
    %89 = vmatpush1.bf16.msra.mxu0 0
    %90 = vmatprep.subr.bf16.mxu0 0
    %91 = vmatpush1.bf16.msra.mxu0 0
    %92 = vmatprep.subr.bf16.mxu0 0
    %93 = vmatpush1.bf16.msra.mxu0 %v76
    %94 = vmatprep.subr.bf16.mxu0 0
    %95 = vmatpush2.bf16.msra.mxu0 0
    %96 = vmatprep.subr.bf16.mxu0 0
    %97 = vmatpush2.bf16.msra.mxu0 0
    %98 = vmatprep.subr.bf16.mxu0 0
    %99 = vmatpush2.bf16.msra.mxu0 0
    %100 = vmatprep.subr.bf16.mxu0 0
    %101 = vmatpush2.bf16.msra.mxu0 0
    %102 = vmatprep.subr.bf16.mxu0 0
    %103 = vmatpush2.bf16.msra.mxu0 0
    %104 = vmatprep.subr.bf16.mxu0 0
    %105 = vmatpush2.bf16.msra.mxu0 0
    %106 = vmatprep.subr.bf16.mxu0 0
    %107 = vmatpush2.bf16.msra.mxu0 0
    %108 = vmatprep.subr.bf16.mxu0 0
    %109 = vmatpush2.bf16.msra.mxu0 0
    %110 = vmatprep.mubr.bf16.mxu0 0
    %111 = vmatmul.mubr.bf16.gmra.mxu0 %v26
    %v112 = vpop.f32.mrf.mxu0
    %v113 = vadd.f32 0.0, %v112
    %v114 = vpop.f32.mrf.mxu0
    %v115 = vpop.f32.mrf.mxu0
    %v116 = vadd.f32 0.0, %v115
    %v117 = vpop.f32.mrf.mxu0
    %118 = vdwg.mxu0
    %s119 = scalar_lea.vmem %s0, 8
    %v120 = vld [vmem:[%s119] sm:$0xf]
    %v122 = vsel %vm28, %v120, 0
    %124 = vmatprep.subr.bf16.mxu0 0
    %125 = vmatpush1.bf16.msra.mxu0 0
    %126 = vmatprep.subr.bf16.mxu0 0
    %127 = vmatpush1.bf16.msra.mxu0 0
    %128 = vmatprep.subr.bf16.mxu0 0
    %129 = vmatpush1.bf16.msra.mxu0 0
    %130 = vmatprep.subr.bf16.mxu0 0
    %131 = vmatpush1.bf16.msra.mxu0 0
    %132 = vmatprep.subr.bf16.mxu0 0
    %133 = vmatpush1.bf16.msra.mxu0 0
    %134 = vmatprep.subr.bf16.mxu0 0
    %135 = vmatpush1.bf16.msra.mxu0 0
    %136 = vmatprep.subr.bf16.mxu0 0
    %137 = vmatpush1.bf16.msra.mxu0 0
    %138 = vmatprep.subr.bf16.mxu0 0
    %139 = vmatpush1.bf16.msra.mxu0 %v122
    %140 = vmatprep.subr.bf16.mxu0 0
    %141 = vmatpush2.bf16.msra.mxu0 0
    %142 = vmatprep.subr.bf16.mxu0 0
    %143 = vmatpush2.bf16.msra.mxu0 0
    %144 = vmatprep.subr.bf16.mxu0 0
    %145 = vmatpush2.bf16.msra.mxu0 0
    %146 = vmatprep.subr.bf16.mxu0 0
    %147 = vmatpush2.bf16.msra.mxu0 0
    %148 = vmatprep.subr.bf16.mxu0 0
    %149 = vmatpush2.bf16.msra.mxu0 0
    %150 = vmatprep.subr.bf16.mxu0 0
    %151 = vmatpush2.bf16.msra.mxu0 0
    %152 = vmatprep.subr.bf16.mxu0 0
    %153 = vmatpush2.bf16.msra.mxu0 0
    %154 = vmatprep.subr.bf16.mxu0 0
    %155 = vmatpush2.bf16.msra.mxu0 0
    %156 = vmatprep.mubr.bf16.mxu0 0
    %157 = vmatmul.mubr.bf16.gmra.mxu0 %v26
    %v158 = vpop.f32.mrf.mxu0
    %v159 = vadd.f32 0.0, %v158
    %v160 = vpop.f32.mrf.mxu0
    %v161 = vpop.f32.mrf.mxu0
    %v162 = vadd.f32 0.0, %v161
    %v163 = vpop.f32.mrf.mxu0
    %164 = vdwg.mxu0
    %s165 = scalar_lea.vmem %s0, 12
    %v166 = vld [vmem:[%s165] sm:$0xf]
    %v168 = vsel %vm28, %v166, 0
    %170 = vmatprep.subr.bf16.mxu0 0
    %171 = vmatpush1.bf16.msra.mxu0 0
    %172 = vmatprep.subr.bf16.mxu0 0
    %173 = vmatpush1.bf16.msra.mxu0 0
    %174 = vmatprep.subr.bf16.mxu0 0
    %175 = vmatpush1.bf16.msra.mxu0 0
    %176 = vmatprep.subr.bf16.mxu0 0
    %177 = vmatpush1.bf16.msra.mxu0 0
    %178 = vmatprep.subr.bf16.mxu0 0
    %179 = vmatpush1.bf16.msra.mxu0 0
    %180 = vmatprep.subr.bf16.mxu0 0
    %181 = vmatpush1.bf16.msra.mxu0 0
    %182 = vmatprep.subr.bf16.mxu0 0
    %183 = vmatpush1.bf16.msra.mxu0 0
    %184 = vmatprep.subr.bf16.mxu0 0
    %185 = vmatpush1.bf16.msra.mxu0 %v168
    %186 = vmatprep.subr.bf16.mxu0 0
    %187 = vmatpush2.bf16.msra.mxu0 0
    %188 = vmatprep.subr.bf16.mxu0 0
    %189 = vmatpush2.bf16.msra.mxu0 0
    %190 = vmatprep.subr.bf16.mxu0 0
    %191 = vmatpush2.bf16.msra.mxu0 0
    %192 = vmatprep.subr.bf16.mxu0 0
    %193 = vmatpush2.bf16.msra.mxu0 0
    %194 = vmatprep.subr.bf16.mxu0 0
    %195 = vmatpush2.bf16.msra.mxu0 0
    %196 = vmatprep.subr.bf16.mxu0 0
    %197 = vmatpush2.bf16.msra.mxu0 0
    %198 = vmatprep.subr.bf16.mxu0 0
    %199 = vmatpush2.bf16.msra.mxu0 0
    %200 = vmatprep.subr.bf16.mxu0 0
    %201 = vmatpush2.bf16.msra.mxu0 0
    %202 = vmatprep.mubr.bf16.mxu0 0
    %203 = vmatmul.mubr.bf16.gmra.mxu0 %v26
    %v204 = vpop.f32.mrf.mxu0
    %v205 = vadd.f32 0.0, %v204
    %v206 = vpop.f32.mrf.mxu0
    %v207 = vpop.f32.mrf.mxu0
    %v208 = vadd.f32 0.0, %v207
    %v209 = vpop.f32.mrf.mxu0
    %210 = vdwg.mxu0
    %v211 = vpack.c.bf16 %v70, %v67
    %v212 = vpack.c.bf16 %v116, %v113
    %v213 = vpack.c.bf16 %v162, %v159
    %v214 = vpack.c.bf16 %v208, %v205
    %v215 = vld [vmem:[%s2] sm:$0xf]
    %v217 = vsel %vm24, %v211, 0
    %v220 = vsel %vm24, %v212, 0
    %v223 = vsel %vm24, %v213, 0
    %v226 = vsel %vm24, %v214, 0
    %v229 = vsel %vm28, %v215, 0
    %231 = vmatprep.subr.bf16.mxu0 0
    %232 = vmatpush1.bf16.msra.mxu0 0
    %233 = vmatprep.subr.bf16.mxu0 0
    %234 = vmatpush1.bf16.msra.mxu0 0
    %235 = vmatprep.subr.bf16.mxu0 0
    %236 = vmatpush1.bf16.msra.mxu0 0
    %237 = vmatprep.subr.bf16.mxu0 0
    %238 = vmatpush1.bf16.msra.mxu0 0
    %239 = vmatprep.subr.bf16.mxu0 0
    %240 = vmatpush1.bf16.msra.mxu0 0
    %241 = vmatprep.subr.bf16.mxu0 0
    %242 = vmatpush1.bf16.msra.mxu0 0
    %243 = vmatprep.subr.bf16.mxu0 0
    %244 = vmatpush1.bf16.msra.mxu0 0
    %245 = vmatprep.subr.bf16.mxu0 0
    %246 = vmatpush1.bf16.msra.mxu0 %v229
    %247 = vmatprep.subr.bf16.mxu0 0
    %248 = vmatpush2.bf16.msra.mxu0 0
    %249 = vmatprep.subr.bf16.mxu0 0
    %250 = vmatpush2.bf16.msra.mxu0 0
    %251 = vmatprep.subr.bf16.mxu0 0
    %252 = vmatpush2.bf16.msra.mxu0 0
    %253 = vmatprep.subr.bf16.mxu0 0
    %254 = vmatpush2.bf16.msra.mxu0 0
    %255 = vmatprep.subr.bf16.mxu0 0
    %256 = vmatpush2.bf16.msra.mxu0 0
    %257 = vmatprep.subr.bf16.mxu0 0
    %258 = vmatpush2.bf16.msra.mxu0 0
    %259 = vmatprep.subr.bf16.mxu0 0
    %260 = vmatpush2.bf16.msra.mxu0 0
    %261 = vmatprep.subr.bf16.mxu0 0
    %262 = vmatpush2.bf16.msra.mxu0 0
    %263 = vmatprep.mubr.bf16.mxu0 0
    %264 = vmatmul.mubr.bf16.gmra.mxu0 %v217
    %v265 = vpop.f32.mrf.mxu0
    %v266 = vadd.f32 0.0, %v265
    %v267 = vpop.f32.mrf.mxu0
    %v268 = vpop.f32.mrf.mxu0
    %v269 = vadd.f32 0.0, %v268
    %v270 = vpop.f32.mrf.mxu0
    %271 = vmatprep.mubr.bf16.mxu0 0
    %272 = vmatmul.mubr.bf16.gmra.mxu0 %v220
    %v273 = vpop.f32.mrf.mxu0
    %v274 = vadd.f32 0.0, %v273
    %v275 = vpop.f32.mrf.mxu0
    %v276 = vpop.f32.mrf.mxu0
    %v277 = vadd.f32 0.0, %v276
    %v278 = vpop.f32.mrf.mxu0
    %279 = vmatprep.mubr.bf16.mxu0 0
    %280 = vmatmul.mubr.bf16.gmra.mxu0 %v223
    %v281 = vpop.f32.mrf.mxu0
    %v282 = vadd.f32 0.0, %v281
    %v283 = vpop.f32.mrf.mxu0
    %v284 = vpop.f32.mrf.mxu0
    %v285 = vadd.f32 0.0, %v284
    %v286 = vpop.f32.mrf.mxu0
    %287 = vmatprep.mubr.bf16.mxu0 0
    %288 = vmatmul.mubr.bf16.gmra.mxu0 %v226
    %v289 = vpop.f32.mrf.mxu0
    %v290 = vadd.f32 0.0, %v289
    %v291 = vpop.f32.mrf.mxu0
    %v292 = vpop.f32.mrf.mxu0
    %v293 = vadd.f32 0.0, %v292
    %v294 = vpop.f32.mrf.mxu0
    %295 = vdwg.mxu0
    %v296 = vxor.u32 %v266, 2147483648
    %v297 = vxor.u32 %v269, 2147483648
    %v298 = vxor.u32 %v274, 2147483648
    %v299 = vxor.u32 %v277, 2147483648
    %v300 = vxor.u32 %v282, 2147483648
    %v301 = vxor.u32 %v285, 2147483648
    %v302 = vxor.u32 %v290, 2147483648
    %v303 = vxor.u32 %v293, 2147483648
    %v304 = vmul.f32 %v296, 1.442695
    %v305 = vpow.pop %v304
    %v306 = vmul.f32 %v297, 1.442695
    %v307 = vpow.pop %v306
    %v308 = vmul.f32 %v298, 1.442695
    %v309 = vpow.pop %v308
    %v310 = vmul.f32 %v299, 1.442695
    %v311 = vpow.pop %v310
    %v312 = vmul.f32 %v300, 1.442695
    %v313 = vpow.pop %v312
    %v314 = vmul.f32 %v301, 1.442695
    %v315 = vpow.pop %v314
    %v316 = vmul.f32 %v302, 1.442695
    %v317 = vpow.pop %v316
    %v318 = vmul.f32 %v303, 1.442695
    %v319 = vpow.pop %v318
    %v320 = vadd.f32 %v305, 1.0
    %v321 = vadd.f32 %v307, 1.0
    %v322 = vadd.f32 %v309, 1.0
    %v323 = vadd.f32 %v311, 1.0
    %v324 = vadd.f32 %v313, 1.0
    %v325 = vadd.f32 %v315, 1.0
    %v326 = vadd.f32 %v317, 1.0
    %v327 = vadd.f32 %v319, 1.0
    %v328 = vrcp.pop %v320
    %v329 = vmul.f32 1.0, %v328
    %v330 = vrcp.pop %v321
    %v331 = vmul.f32 1.0, %v330
    %v332 = vrcp.pop %v322
    %v333 = vmul.f32 1.0, %v332
    %v334 = vrcp.pop %v323
    %v335 = vmul.f32 1.0, %v334
    %v336 = vrcp.pop %v324
    %v337 = vmul.f32 1.0, %v336
    %v338 = vrcp.pop %v325
    %v339 = vmul.f32 1.0, %v338
    %v340 = vrcp.pop %v326
    %v341 = vmul.f32 1.0, %v340
    %v342 = vrcp.pop %v327
    %v343 = vmul.f32 1.0, %v342
    %vm344 = vcmask 130048
    %345 = vst.msk [vmem:[#allocation2] sm:$0xff] %vm344, %v329
    %346 = vst.msk [vmem:[#allocation2 + $0x8] sm:$0xff] %vm344, %v331
    %347 = vst.msk [vmem:[#allocation2 + $0x10] sm:$0xff] %vm344, %v333
    %348 = vst.msk [vmem:[#allocation2 + $0x18] sm:$0xff] %vm344, %v335
    %349 = vst.msk [vmem:[#allocation2 + $0x20] sm:$0xff] %vm344, %v337
    %350 = vst.msk [vmem:[#allocation2 + $0x28] sm:$0xff] %vm344, %v339
    %351 = vst.msk [vmem:[#allocation2 + $0x30] sm:$0xff] %vm344, %v341
    %352 = vst.msk [vmem:[#allocation2 + $0x38] sm:$0xff] %vm344, %v343
    // Predicated region
    $region14: #{base_model_forward.3} parent=1 // pred_check
      _
    $region15: #{base_model_forward.3} parent=1 // pred_check_branch
      %354 = sbr.rel (0) target = $region17
    $region16: #{base_model_forward.3} parent=1 // pred_region
      %s356 = ssub.s32 1024, 1024
      %357 = vsyncadd [#allocation3], %s356
      %s358 = sshll.u32 [#allocation2], 4
      %s359 = int_to_ptr.vmem [resolvable:$true] %s358
      %364 = dma.vmem_to_hbm [thread:$0]  %s359, 1024, %s3, [#allocation3], 128, 128, 8
    $region17: #{base_model_forward.3} parent=1 // pred_fallthru
      _
    // Predicated region
    $region18: #{base_model_forward.3} parent=1 // pred_check
      _
    $region19: #{base_model_forward.3} parent=1 // pred_check_branch
      %366 = sbr.rel (0) target = $region21
    $region20: #{base_model_forward.3} parent=1 // pred_region
      %367 = dma.done [#allocation3], 1024
    $region21: #{base_model_forward.3} parent=1 // pred_fallthru
      _
    %368 = vsyncpa [#allocation3], 1

// kernel: base_model_forward.2
$region0: #{base_model_forward.2}
  #allocation0 [shape = 'u32[]', space=smem, size = 0x4, offset = 0x4, fixed_abs, tag = 'smem constant byte address 0x4 - core index']
  #allocation1 [shape = 'u32[144,128]{1,0:T(1,128)}', space=vmem, size = 0x12000, scoped, tag = 'internal scratch']
  %s0 = inlined_call_operand.vmem [shape: bf16[2,4,9,9,4], index: 0, kind: input, shape index: {}]
  %s1 = inlined_call_operand.vmem [shape: bf16[36,128], index: 1, kind: input, shape index: {}]
  %s2 = inlined_call_operand.vmem [shape: f32[1,128], index: 2, kind: input, shape index: {}]
  %s3 = inlined_call_operand.vmem [shape: bf16[128,128], index: 3, kind: input, shape index: {}]
  %s4 = inlined_call_operand.vmem [shape: f32[1,128], index: 4, kind: input, shape index: {}]
  %s5 = inlined_call_operand.vmem [shape: f32[2,2,64], index: 5, kind: output, shape index: {}]
  %s6 = sld [smem:[#allocation0]]
  $region53: #{base_model_forward.2} parent=0
    _
  %s8 = ssub.s32 1, %s6
  %s9 = scalar_select 0, %s8, %s6
  loop: start=0, step=1, limit=4
  $region2: #{base_model_forward.2} parent=0 // loop_pre_header
    _
  $region3: #{base_model_forward.2} parent=0 // loop_header
    %s11 = sphi 0, %s15
    %p12 = scmp.ge.s32.totalorder %s11, 4
    %s18 = sphi 0, %s30
    %s19 = sphi 0, %s26
    %s20 = sphi 0, %s18
    %s21 = sphi 0, %s19
    %s22 = sphi 0, %s20
    %s23 = sphi 0, %s21
    %s33 = sphi 0, %s35
    %s36 = sphi 0, %s33
    %s37 = sphi 0, %s36
    %s53 = sphi 0, %s37
    %s57 = sphi 0, %s57
    %s59 = sphi 0, %s57
    %s60 = sphi 0, %s59
    %s74 = sphi 0, %s60
    %s78 = sphi 0, %s78
    %s80 = sphi 0, %s78
    %s81 = sphi 0, %s80
    %s95 = sphi 0, %s81
    %s99 = sphi 0, %s99
    %s101 = sphi 0, %s99
    %s102 = sphi 0, %s101
    %s116 = sphi 0, %s102
    %s120 = sphi 0, %s120
    %s122 = sphi 0, %s120
    %s123 = sphi 0, %s122
    %s137 = sphi 0, %s123
    %s145 = sphi 0, %s147
    %s148 = sphi 0, %s145
    %s149 = sphi 0, %s148
    %s165 = sphi 0, %s149
  $region4: #{base_model_forward.2} parent=0 // loop_header_branch
    %14 = sbr.rel (%p12) target = $region8
  $region5: #{base_model_forward.2} parent=0 // loop_body
    %s16 = ssub.s32 %s11, 1
    %s17 = ssub.s32 %s11, 2
    %s24 = sadd.s32 1, %s19
    %p25 = scmp.ge.s32.totalorder %s24, 1
    %s26 = scalar_select %p25, 0, %s24
    %s27 = sadd.s32 1, %s18
    %s28 = scalar_select %p25, %s27, %s18
    %p29 = scmp.ge.s32.totalorder %s28, 2
    %s30 = scalar_select %p29, 0, %s28
    %s31 = ssub.s32 %s18, %s30
    %p32 = scmp.eq.s32.totalorder %s31, 0
    %s34 = sadd.s32 %s33, 1
    %s35 = scalar_select %p32, %s33, %s34
    %p38 = pneg %p32
    %p39 = scmp.eq.s32.totalorder %s11, 1
    %p40 = por %p38, %p39
    %p41 = scmp.ne.s32.totalorder %s33, %s36
    %p42 = scmp.eq.s32.totalorder %s11, 0
    %p43 = por %p41, %p42
    %p44 = scmp.ne.s32.totalorder %s33, %s36
    %p45 = scmp.eq.s32.totalorder %s16, 1
    %p46 = por %p44, %p45
    %p47 = scmp.ne.s32.totalorder %s36, %s37
    %p48 = scmp.eq.s32.totalorder %s16, 0
    %p49 = por %p47, %p48
    %p50 = scmp.ne.s32.totalorder %s36, %s37
    %p51 = scmp.eq.s32.totalorder %s17, 1
    %p52 = por %p50, %p51
    %p54 = scmp.ne.s32.totalorder %s37, %s53
    %p55 = scmp.eq.s32.totalorder %s17, 0
    %p56 = por %p54, %p55
    %s58 = sadd.s32 %s57, 1
    %p61 = scmp.eq.s32.totalorder %s11, 1
    %p62 = scmp.ne.s32.totalorder %s57, %s59
    %p63 = scmp.eq.s32.totalorder %s11, 0
    %p64 = por %p62, %p63
    %p65 = scmp.ne.s32.totalorder %s57, %s59
    %p66 = scmp.eq.s32.totalorder %s16, 1
    %p67 = por %p65, %p66
    %p68 = scmp.ne.s32.totalorder %s59, %s60
    %p69 = scmp.eq.s32.totalorder %s16, 0
    %p70 = por %p68, %p69
    %p71 = scmp.ne.s32.totalorder %s59, %s60
    %p72 = scmp.eq.s32.totalorder %s17, 1
    %p73 = por %p71, %p72
    %p75 = scmp.ne.s32.totalorder %s60, %s74
    %p76 = scmp.eq.s32.totalorder %s17, 0
    %p77 = por %p75, %p76
    %s79 = sadd.s32 %s78, 1
    %p82 = scmp.eq.s32.totalorder %s11, 1
    %p83 = scmp.ne.s32.totalorder %s78, %s80
    %p84 = scmp.eq.s32.totalorder %s11, 0
    %p85 = por %p83, %p84
    %p86 = scmp.ne.s32.totalorder %s78, %s80
    %p87 = scmp.eq.s32.totalorder %s16, 1
    %p88 = por %p86, %p87
    %p89 = scmp.ne.s32.totalorder %s80, %s81
    %p90 = scmp.eq.s32.totalorder %s16, 0
    %p91 = por %p89, %p90
    %p92 = scmp.ne.s32.totalorder %s80, %s81
    %p93 = scmp.eq.s32.totalorder %s17, 1
    %p94 = por %p92, %p93
    %p96 = scmp.ne.s32.totalorder %s81, %s95
    %p97 = scmp.eq.s32.totalorder %s17, 0
    %p98 = por %p96, %p97
    %s100 = sadd.s32 %s99, 1
    %p103 = scmp.eq.s32.totalorder %s11, 1
    %p104 = scmp.ne.s32.totalorder %s99, %s101
    %p105 = scmp.eq.s32.totalorder %s11, 0
    %p106 = por %p104, %p105
    %p107 = scmp.ne.s32.totalorder %s99, %s101
    %p108 = scmp.eq.s32.totalorder %s16, 1
    %p109 = por %p107, %p108
    %p110 = scmp.ne.s32.totalorder %s101, %s102
    %p111 = scmp.eq.s32.totalorder %s16, 0
    %p112 = por %p110, %p111
    %p113 = scmp.ne.s32.totalorder %s101, %s102
    %p114 = scmp.eq.s32.totalorder %s17, 1
    %p115 = por %p113, %p114
    %p117 = scmp.ne.s32.totalorder %s102, %s116
    %p118 = scmp.eq.s32.totalorder %s17, 0
    %p119 = por %p117, %p118
    %s121 = sadd.s32 %s120, 1
    %p124 = scmp.eq.s32.totalorder %s11, 1
    %p125 = scmp.ne.s32.totalorder %s120, %s122
    %p126 = scmp.eq.s32.totalorder %s11, 0
    %p127 = por %p125, %p126
    %p128 = scmp.ne.s32.totalorder %s120, %s122
    %p129 = scmp.eq.s32.totalorder %s16, 1
    %p130 = por %p128, %p129
    %p131 = scmp.ne.s32.totalorder %s122, %s123
    %p132 = scmp.eq.s32.totalorder %s16, 0
    %p133 = por %p131, %p132
    %p134 = scmp.ne.s32.totalorder %s122, %s123
    %p135 = scmp.eq.s32.totalorder %s17, 1
    %p136 = por %p134, %p135
    %p138 = scmp.ne.s32.totalorder %s123, %s137
    %p139 = scmp.eq.s32.totalorder %s17, 0
    %p140 = por %p138, %p139
    %s141 = ssub.s32 %s18, %s30
    %s142 = ssub.s32 %s19, %s26
    %s143 = sor.u32 %s141, %s142
    %p144 = scmp.eq.s32.totalorder %s143, 0
    %s146 = sadd.s32 %s145, 1
    %s147 = scalar_select %p144, %s145, %s146
    %p150 = pneg %p144
    %p151 = scmp.eq.s32.totalorder %s11, 1
    %p152 = por %p150, %p151
    %p153 = scmp.ne.s32.totalorder %s145, %s148
    %p154 = scmp.eq.s32.totalorder %s11, 0
    %p155 = por %p153, %p154
    %p156 = scmp.ne.s32.totalorder %s145, %s148
    %p157 = scmp.eq.s32.totalorder %s16, 1
    %p158 = por %p156, %p157
    %p159 = scmp.ne.s32.totalorder %s148, %s149
    %p160 = scmp.eq.s32.totalorder %s16, 0
    %p161 = por %p159, %p160
    %p162 = scmp.ne.s32.totalorder %s148, %s149
    %p163 = scmp.eq.s32.totalorder %s17, 1
    %p164 = por %p162, %p163
    %p166 = scmp.ne.s32.totalorder %s149, %s165
    %p167 = scmp.eq.s32.totalorder %s17, 0
    %p168 = por %p166, %p167
    %p169 = scmp.le.s32.totalorder 1, %s11
    %p170 = scmp.lt.s32.totalorder %s11, 3
    %p171 = pnand %p169, %p170
    %p172 = pneg %p171
    // Predicated region
    $region9: #{base_model_forward.2} parent=5 // pred_check
      _
    $region10: #{base_model_forward.2} parent=5 // pred_check_branch
      %174 = sbr.rel (%p171) target = $region12
    $region11: #{base_model_forward.2} parent=5 // pred_region
      %s175 = ssub.s32 %s11, 1
      // Predicated region
      $region13: #{base_model_forward.2} parent=11 // pred_check
        %p176 = pneg %p70
      $region14: #{base_model_forward.2} parent=11 // pred_check_branch
        %178 = sbr.rel (%p176) target = $region16
      $region15: #{base_model_forward.2} parent=11 // pred_region
        _
      $region16: #{base_model_forward.2} parent=11 // pred_fallthru
        _
      // Predicated region
      $region17: #{base_model_forward.2} parent=11 // pred_check
        %p179 = pneg %p91
      $region18: #{base_model_forward.2} parent=11 // pred_check_branch
        %181 = sbr.rel (%p179) target = $region20
      $region19: #{base_model_forward.2} parent=11 // pred_region
        _
      $region20: #{base_model_forward.2} parent=11 // pred_fallthru
        _
      // Predicated region
      $region21: #{base_model_forward.2} parent=11 // pred_check
        %p182 = pneg %p112
      $region22: #{base_model_forward.2} parent=11 // pred_check_branch
        %184 = sbr.rel (%p182) target = $region24
      $region23: #{base_model_forward.2} parent=11 // pred_region
        _
      $region24: #{base_model_forward.2} parent=11 // pred_fallthru
        _
      // Predicated region
      $region25: #{base_model_forward.2} parent=11 // pred_check
        %p185 = pneg %p133
      $region26: #{base_model_forward.2} parent=11 // pred_check_branch
        %187 = sbr.rel (%p185) target = $region28
      $region27: #{base_model_forward.2} parent=11 // pred_region
        _
      $region28: #{base_model_forward.2} parent=11 // pred_fallthru
        _
    $region12: #{base_model_forward.2} parent=5 // pred_fallthru
      _
    %p188 = scmp.lt.s32.totalorder %s11, 2
    // Predicated region
    $region29: #{base_model_forward.2} parent=5 // pred_check
      %p189 = pneg %p188
    $region30: #{base_model_forward.2} parent=5 // pred_check_branch
      %191 = sbr.rel (%p189) target = $region32
    $region31: #{base_model_forward.2} parent=5 // pred_region
      // Predicated region
      $region33: #{base_model_forward.2} parent=31 // pred_check
        %p192 = pneg %p43
      $region34: #{base_model_forward.2} parent=31 // pred_check_branch
        %194 = sbr.rel (%p192) target = $region36
      $region35: #{base_model_forward.2} parent=31 // pred_region
        %p195 = scmp.lt.s32.totalorder %s18, 1
        %s196 = scalar_select %p195, %s18, 1
        %s197 = smul.addr %s196, 72
        %s198 = smul.addr %s197, 4
        %s199 = scalar_lea.vmem %s0, %s198
      $region36: #{base_model_forward.2} parent=31 // pred_fallthru
        _
    $region32: #{base_model_forward.2} parent=5 // pred_fallthru
      _
    %p200 = scmp.le.s32.totalorder 1, %s11
    %p201 = scmp.lt.s32.totalorder %s11, 3
    %p202 = pnand %p200, %p201
    %p203 = pneg %p202
    // Predicated region
    $region37: #{base_model_forward.2} parent=5 // pred_check
      _
    $region38: #{base_model_forward.2} parent=5 // pred_check_branch
      %205 = sbr.rel (%p202) target = $region40
    $region39: #{base_model_forward.2} parent=5 // pred_region
      %s206 = ssub.s32 %s11, 1
      %p207 = scmp.lt.s32.totalorder %s20, 1
      %s208 = scalar_select %p207, %s20, 1
      %s209 = smul.addr %s208, 72
      %s210 = smul.addr %s209, 4
      %s211 = scalar_lea.vmem %s0, %s210
      %p212 = pneg %p49
      %p213 = pneg %p46
      %p214 = pneg %p70
      %p215 = pneg %p67
      %p216 = pneg %p91
      %p217 = pneg %p88
      %p218 = pneg %p112
      %p219 = pneg %p109
      %p220 = pneg %p133
      %p221 = pneg %p130
      %p222 = pneg %p161
      %p223 = pneg %p158
      %p224 = scmp.lt.s32.totalorder %s20, 1
      %s225 = scalar_select %p224, %s20, 1
      %p226 = scmp.lt.s32.totalorder %s21, 0
      %s227 = scalar_select %p226, %s21, 0
      %s228 = sadd.s32 %s227, %s225
      %s229 = smul.addr %s228, 2
      %s230 = scalar_lea.vmem %s5, %s229
      %p231 = scmp.lt.s32.totalorder %s20, 1
      %s232 = scalar_select %p231, %s20, 1
      %s233 = smul.addr %s232, 72
      %s234 = smul.addr %s233, 4
      %s235 = scalar_lea.vmem %s0, %s234
      %p236 = scmp.lt.s32.totalorder %s20, 1
      %s237 = scalar_select %p236, %s20, 1
      %p238 = scmp.lt.s32.totalorder %s21, 0
      %s239 = scalar_select %p238, %s21, 0
      %s240 = sadd.s32 %s239, %s237
      %s241 = smul.addr %s240, 2
      %s242 = scalar_lea.vmem %s5, %s241
      %s244 = smul.u32 %s21, 8
      %s245 = smul.u32 %s244, 2
      %s246 = smul.addr %s245, 4
      %s247 = scalar_lea.vmem %s235, %s246
      %v248 = vld [vmem:[%s247] sm:$0xf]
      %v249 = vld [vmem:[%s247 + $0x8] sm:$0xf]
      %v250 = vld [vmem:[%s247 + $0x10] sm:$0xf]
      %v251 = vld [vmem:[%s247 + $0x18] sm:$0xf]
      %v252 = vld [vmem:[%s247 + $0x20] sm:$0xf]
      %v253 = vld [vmem:[%s247 + $0x28] sm:$0xf]
      %v254 = vld [vmem:[%s247 + $0x30] sm:$0xf]
      %v255 = vld [vmem:[%s247 + $0x38] sm:$0xf]
      %s256 = sadd.s32 %s245, 18
      %s257 = smul.addr %s256, 4
      %s258 = scalar_lea.vmem %s235, %s257
      %v259 = vld [vmem:[%s258] sm:$0xf]
      %v260 = vld [vmem:[%s258 + $0x8] sm:$0xf]
      %v261 = vld [vmem:[%s258 + $0x10] sm:$0xf]
      %v262 = vld [vmem:[%s258 + $0x18] sm:$0xf]
      %v263 = vld [vmem:[%s258 + $0x20] sm:$0xf]
      %v264 = vld [vmem:[%s258 + $0x28] sm:$0xf]
      %v265 = vld [vmem:[%s258 + $0x30] sm:$0xf]
      %v266 = vld [vmem:[%s258 + $0x38] sm:$0xf]
      %v267 = vld [vmem:[%s247 + $0x4] sm:$0x1]
      %v268 = vld [vmem:[%s247 + $0xc] sm:$0x1]
      %v269 = vld [vmem:[%s247 + $0x14] sm:$0x1]
      %v270 = vld [vmem:[%s247 + $0x1c] sm:$0x1]
      %v271 = vld [vmem:[%s247 + $0x24] sm:$0x1]
      %v272 = vld [vmem:[%s247 + $0x2c] sm:$0x1]
      %v273 = vld [vmem:[%s247 + $0x34] sm:$0x1]
      %v274 = vld [vmem:[%s247 + $0x3c] sm:$0x1]
      %vm275 = vsmask.f32 3328
      %vm276 = vsmask.f32 7440
      %vm277 = vmor %vm275, %vm276
      %v279 = vshrl.u32 %v248, 16
      %v281 = vrot.slane %v279, 4
      %v282 = vshll.u32 %v248, 16
      %v284 = vrot.slane %v282, 5
      %v285 = vor.u32 %v281, %v284
      %v286 = vrot.slane %v285, 4
      %v288 = vshll.u32 %v267, 16
      %v290 = vrot.slane %v288, 5
      %v291 = vsel %vm277, %v286, %v290
      %v293 = vshrl.u32 %v249, 16
      %v295 = vrot.slane %v293, 4
      %v296 = vshll.u32 %v249, 16
      %v298 = vrot.slane %v296, 5
      %v299 = vor.u32 %v295, %v298
      %v300 = vrot.slane %v299, 4
      %v302 = vshll.u32 %v268, 16
      %v304 = vrot.slane %v302, 5
      %v305 = vsel %vm277, %v300, %v304
      %v307 = vshrl.u32 %v250, 16
      %v309 = vrot.slane %v307, 4
      %v310 = vshll.u32 %v250, 16
      %v312 = vrot.slane %v310, 5
      %v313 = vor.u32 %v309, %v312
      %v314 = vrot.slane %v313, 4
      %v316 = vshll.u32 %v269, 16
      %v318 = vrot.slane %v316, 5
      %v319 = vsel %vm277, %v314, %v318
      %v321 = vshrl.u32 %v251, 16
      %v323 = vrot.slane %v321, 4
      %v324 = vshll.u32 %v251, 16
      %v326 = vrot.slane %v324, 5
      %v327 = vor.u32 %v323, %v326
      %v328 = vrot.slane %v327, 4
      %v330 = vshll.u32 %v270, 16
      %v332 = vrot.slane %v330, 5
      %v333 = vsel %vm277, %v328, %v332
      %v335 = vshrl.u32 %v252, 16
      %v337 = vrot.slane %v335, 4
      %v338 = vshll.u32 %v252, 16
      %v340 = vrot.slane %v338, 5
      %v341 = vor.u32 %v337, %v340
      %v342 = vrot.slane %v341, 4
      %v344 = vshll.u32 %v271, 16
      %v346 = vrot.slane %v344, 5
      %v347 = vsel %vm277, %v342, %v346
      %v349 = vshrl.u32 %v253, 16
      %v351 = vrot.slane %v349, 4
      %v352 = vshll.u32 %v253, 16
      %v354 = vrot.slane %v352, 5
      %v355 = vor.u32 %v351, %v354
      %v356 = vrot.slane %v355, 4
      %v358 = vshll.u32 %v272, 16
      %v360 = vrot.slane %v358, 5
      %v361 = vsel %vm277, %v356, %v360
      %v363 = vshrl.u32 %v254, 16
      %v365 = vrot.slane %v363, 4
      %v366 = vshll.u32 %v254, 16
      %v368 = vrot.slane %v366, 5
      %v369 = vor.u32 %v365, %v368
      %v370 = vrot.slane %v369, 4
      %v372 = vshll.u32 %v273, 16
      %v374 = vrot.slane %v372, 5
      %v375 = vsel %vm277, %v370, %v374
      %v377 = vshrl.u32 %v255, 16
      %v379 = vrot.slane %v377, 4
      %v380 = vshll.u32 %v255, 16
      %v382 = vrot.slane %v380, 5
      %v383 = vor.u32 %v379, %v382
      %v384 = vrot.slane %v383, 4
      %v386 = vshll.u32 %v274, 16
      %v388 = vrot.slane %v386, 5
      %v389 = vsel %vm277, %v384, %v388
      %s390 = sadd.s32 %s245, 36
      %s391 = smul.addr %s390, 4
      %s392 = scalar_lea.vmem %s235, %s391
      %v393 = vld [vmem:[%s392] sm:$0xf]
      %v394 = vld [vmem:[%s392 + $0x8] sm:$0xf]
      %v395 = vld [vmem:[%s392 + $0x10] sm:$0xf]
      %v396 = vld [vmem:[%s392 + $0x18] sm:$0xf]
      %v397 = vld [vmem:[%s392 + $0x20] sm:$0xf]
      %v398 = vld [vmem:[%s392 + $0x28] sm:$0xf]
      %v399 = vld [vmem:[%s392 + $0x30] sm:$0xf]
      %v400 = vld [vmem:[%s392 + $0x38] sm:$0xf]
      %s401 = sadd.s32 %s245, 54
      %s402 = smul.addr %s401, 4
      %s403 = scalar_lea.vmem %s235, %s402
      %v404 = vld [vmem:[%s403] sm:$0xf]
      %v405 = vld [vmem:[%s403 + $0x8] sm:$0xf]
      %v406 = vld [vmem:[%s403 + $0x10] sm:$0xf]
      %v407 = vld [vmem:[%s403 + $0x18] sm:$0xf]
      %v408 = vld [vmem:[%s403 + $0x20] sm:$0xf]
      %v409 = vld [vmem:[%s403 + $0x28] sm:$0xf]
      %v410 = vld [vmem:[%s403 + $0x30] sm:$0xf]
      %v411 = vld [vmem:[%s403 + $0x38] sm:$0xf]
      %v412 = vld [vmem:[%s392 + $0x4] sm:$0x1]
      %v413 = vld [vmem:[%s392 + $0xc] sm:$0x1]
      %v414 = vld [vmem:[%s392 + $0x14] sm:$0x1]
      %v415 = vld [vmem:[%s392 + $0x1c] sm:$0x1]
      %v416 = vld [vmem:[%s392 + $0x24] sm:$0x1]
      %v417 = vld [vmem:[%s392 + $0x2c] sm:$0x1]
      %v418 = vld [vmem:[%s392 + $0x34] sm:$0x1]
      %v419 = vld [vmem:[%s392 + $0x3c] sm:$0x1]
      %v421 = vshrl.u32 %v393, 16
      %v423 = vrot.slane %v421, 4
      %v424 = vshll.u32 %v393, 16
      %v426 = vrot.slane %v424, 5
      %v427 = vor.u32 %v423, %v426
      %v428 = vrot.slane %v427, 4
      %v430 = vshll.u32 %v412, 16
      %v432 = vrot.slane %v430, 5
      %v433 = vsel %vm277, %v428, %v432
      %v435 = vshrl.u32 %v394, 16
      %v437 = vrot.slane %v435, 4
      %v438 = vshll.u32 %v394, 16
      %v440 = vrot.slane %v438, 5
      %v441 = vor.u32 %v437, %v440
      %v442 = vrot.slane %v441, 4
      %v444 = vshll.u32 %v413, 16
      %v446 = vrot.slane %v444, 5
      %v447 = vsel %vm277, %v442, %v446
      %v449 = vshrl.u32 %v395, 16
      %v451 = vrot.slane %v449, 4
      %v452 = vshll.u32 %v395, 16
      %v454 = vrot.slane %v452, 5
      %v455 = vor.u32 %v451, %v454
      %v456 = vrot.slane %v455, 4
      %v458 = vshll.u32 %v414, 16
      %v460 = vrot.slane %v458, 5
      %v461 = vsel %vm277, %v456, %v460
      %v463 = vshrl.u32 %v396, 16
      %v465 = vrot.slane %v463, 4
      %v466 = vshll.u32 %v396, 16
      %v468 = vrot.slane %v466, 5
      %v469 = vor.u32 %v465, %v468
      %v470 = vrot.slane %v469, 4
      %v472 = vshll.u32 %v415, 16
      %v474 = vrot.slane %v472, 5
      %v475 = vsel %vm277, %v470, %v474
      %v477 = vshrl.u32 %v397, 16
      %v479 = vrot.slane %v477, 4
      %v480 = vshll.u32 %v397, 16
      %v482 = vrot.slane %v480, 5
      %v483 = vor.u32 %v479, %v482
      %v484 = vrot.slane %v483, 4
      %v486 = vshll.u32 %v416, 16
      %v488 = vrot.slane %v486, 5
      %v489 = vsel %vm277, %v484, %v488
      %v491 = vshrl.u32 %v398, 16
      %v493 = vrot.slane %v491, 4
      %v494 = vshll.u32 %v398, 16
      %v496 = vrot.slane %v494, 5
      %v497 = vor.u32 %v493, %v496
      %v498 = vrot.slane %v497, 4
      %v500 = vshll.u32 %v417, 16
      %v502 = vrot.slane %v500, 5
      %v503 = vsel %vm277, %v498, %v502
      %v505 = vshrl.u32 %v399, 16
      %v507 = vrot.slane %v505, 4
      %v508 = vshll.u32 %v399, 16
      %v510 = vrot.slane %v508, 5
      %v511 = vor.u32 %v507, %v510
      %v512 = vrot.slane %v511, 4
      %v514 = vshll.u32 %v418, 16
      %v516 = vrot.slane %v514, 5
      %v517 = vsel %vm277, %v512, %v516
      %v519 = vshrl.u32 %v400, 16
      %v521 = vrot.slane %v519, 4
      %v522 = vshll.u32 %v400, 16
      %v524 = vrot.slane %v522, 5
      %v525 = vor.u32 %v521, %v524
      %v526 = vrot.slane %v525, 4
      %v528 = vshll.u32 %v419, 16
      %v530 = vrot.slane %v528, 5
      %v531 = vsel %vm277, %v526, %v530
      %s532 = sadd.s32 %s244, 1
      %s533 = smul.u32 %s532, 2
      %s534 = smul.addr %s533, 4
      %s535 = scalar_lea.vmem %s235, %s534
      %v536 = vld [vmem:[%s535] sm:$0xf]
      %v537 = vld [vmem:[%s535 + $0x8] sm:$0xf]
      %v538 = vld [vmem:[%s535 + $0x10] sm:$0xf]
      %v539 = vld [vmem:[%s535 + $0x18] sm:$0xf]
      %v540 = vld [vmem:[%s535 + $0x20] sm:$0xf]
      %v541 = vld [vmem:[%s535 + $0x28] sm:$0xf]
      %v542 = vld [vmem:[%s535 + $0x30] sm:$0xf]
      %v543 = vld [vmem:[%s535 + $0x38] sm:$0xf]
      %s544 = sadd.s32 %s533, 18
      %s545 = smul.addr %s544, 4
      %s546 = scalar_lea.vmem %s235, %s545
      %v547 = vld [vmem:[%s546] sm:$0xf]
      %v548 = vld [vmem:[%s546 + $0x8] sm:$0xf]
      %v549 = vld [vmem:[%s546 + $0x10] sm:$0xf]
      %v550 = vld [vmem:[%s546 + $0x18] sm:$0xf]
      %v551 = vld [vmem:[%s546 + $0x20] sm:$0xf]
      %v552 = vld [vmem:[%s546 + $0x28] sm:$0xf]
      %v553 = vld [vmem:[%s546 + $0x30] sm:$0xf]
      %v554 = vld [vmem:[%s546 + $0x38] sm:$0xf]
      %v555 = vld [vmem:[%s535 + $0x4] sm:$0x1]
      %v556 = vld [vmem:[%s535 + $0xc] sm:$0x1]
      %v557 = vld [vmem:[%s535 + $0x14] sm:$0x1]
      %v558 = vld [vmem:[%s535 + $0x1c] sm:$0x1]
      %v559 = vld [vmem:[%s535 + $0x24] sm:$0x1]
      %v560 = vld [vmem:[%s535 + $0x2c] sm:$0x1]
      %v561 = vld [vmem:[%s535 + $0x34] sm:$0x1]
      %v562 = vld [vmem:[%s535 + $0x3c] sm:$0x1]
      %v564 = vshrl.u32 %v536, 16
      %v566 = vrot.slane %v564, 4
      %v567 = vshll.u32 %v536, 16
      %v569 = vrot.slane %v567, 5
      %v570 = vor.u32 %v566, %v569
      %v571 = vrot.slane %v570, 4
      %v573 = vshll.u32 %v555, 16
      %v575 = vrot.slane %v573, 5
      %v576 = vsel %vm277, %v571, %v575
      %v578 = vshrl.u32 %v537, 16
      %v580 = vrot.slane %v578, 4
      %v581 = vshll.u32 %v537, 16
      %v583 = vrot.slane %v581, 5
      %v584 = vor.u32 %v580, %v583
      %v585 = vrot.slane %v584, 4
      %v587 = vshll.u32 %v556, 16
      %v589 = vrot.slane %v587, 5
      %v590 = vsel %vm277, %v585, %v589
      %v592 = vshrl.u32 %v538, 16
      %v594 = vrot.slane %v592, 4
      %v595 = vshll.u32 %v538, 16
      %v597 = vrot.slane %v595, 5
      %v598 = vor.u32 %v594, %v597
      %v599 = vrot.slane %v598, 4
      %v601 = vshll.u32 %v557, 16
      %v603 = vrot.slane %v601, 5
      %v604 = vsel %vm277, %v599, %v603
      %v606 = vshrl.u32 %v539, 16
      %v608 = vrot.slane %v606, 4
      %v609 = vshll.u32 %v539, 16
      %v611 = vrot.slane %v609, 5
      %v612 = vor.u32 %v608, %v611
      %v613 = vrot.slane %v612, 4
      %v615 = vshll.u32 %v558, 16
      %v617 = vrot.slane %v615, 5
      %v618 = vsel %vm277, %v613, %v617
      %v620 = vshrl.u32 %v540, 16
      %v622 = vrot.slane %v620, 4
      %v623 = vshll.u32 %v540, 16
      %v625 = vrot.slane %v623, 5
      %v626 = vor.u32 %v622, %v625
      %v627 = vrot.slane %v626, 4
      %v629 = vshll.u32 %v559, 16
      %v631 = vrot.slane %v629, 5
      %v632 = vsel %vm277, %v627, %v631
      %v634 = vshrl.u32 %v541, 16
      %v636 = vrot.slane %v634, 4
      %v637 = vshll.u32 %v541, 16
      %v639 = vrot.slane %v637, 5
      %v640 = vor.u32 %v636, %v639
      %v641 = vrot.slane %v640, 4
      %v643 = vshll.u32 %v560, 16
      %v645 = vrot.slane %v643, 5
      %v646 = vsel %vm277, %v641, %v645
      %v648 = vshrl.u32 %v542, 16
      %v650 = vrot.slane %v648, 4
      %v651 = vshll.u32 %v542, 16
      %v653 = vrot.slane %v651, 5
      %v654 = vor.u32 %v650, %v653
      %v655 = vrot.slane %v654, 4
      %v657 = vshll.u32 %v561, 16
      %v659 = vrot.slane %v657, 5
      %v660 = vsel %vm277, %v655, %v659
      %v662 = vshrl.u32 %v543, 16
      %v664 = vrot.slane %v662, 4
      %v665 = vshll.u32 %v543, 16
      %v667 = vrot.slane %v665, 5
      %v668 = vor.u32 %v664, %v667
      %v669 = vrot.slane %v668, 4
      %v671 = vshll.u32 %v562, 16
      %v673 = vrot.slane %v671, 5
      %v674 = vsel %vm277, %v669, %v673
      %v683 = vunpack.c.l.b16 %v248
      %v684 = vunpack.c.l.b16 %v249
      %v685 = vunpack.c.l.b16 %v250
      %v686 = vunpack.c.l.b16 %v251
      %v687 = vunpack.c.l.b16 %v252
      %v688 = vunpack.c.l.b16 %v253
      %v689 = vunpack.c.l.b16 %v254
      %v690 = vunpack.c.l.b16 %v255
      %v691 = vpack.c.b16 %v684, %v683
      %v692 = vpack.c.b16 %v686, %v685
      %v693 = vpack.c.b16 %v688, %v687
      %v694 = vpack.c.b16 %v690, %v689
      %v703 = vunpack.c.l.b16 %v259
      %v704 = vunpack.c.l.b16 %v260
      %v705 = vunpack.c.l.b16 %v261
      %v706 = vunpack.c.l.b16 %v262
      %v707 = vunpack.c.l.b16 %v263
      %v708 = vunpack.c.l.b16 %v264
      %v709 = vunpack.c.l.b16 %v265
      %v710 = vunpack.c.l.b16 %v266
      %v711 = vpack.c.b16 %v704, %v703
      %v712 = vpack.c.b16 %v706, %v705
      %v713 = vpack.c.b16 %v708, %v707
      %v714 = vpack.c.b16 %v710, %v709
      %715 = vrot.lane.b32.xlu0 %v711, 4
      %v716 = vpop.permute.xlu0 %715
      %717 = vrot.lane.b32.xlu0 %v712, 4
      %v718 = vpop.permute.xlu0 %717
      %719 = vrot.lane.b32.xlu0 %v713, 4
      %v720 = vpop.permute.xlu0 %719
      %721 = vrot.lane.b32.xlu0 %v714, 4
      %v722 = vpop.permute.xlu0 %721
      %v723 = vunpack.c.l.b16 %v291
      %v724 = vunpack.c.l.b16 %v305
      %v725 = vunpack.c.l.b16 %v319
      %v726 = vunpack.c.l.b16 %v333
      %v727 = vunpack.c.l.b16 %v347
      %v728 = vunpack.c.l.b16 %v361
      %v729 = vunpack.c.l.b16 %v375
      %v730 = vunpack.c.l.b16 %v389
      %v731 = vpack.c.b16 %v724, %v723
      %v732 = vpack.c.b16 %v726, %v725
      %v733 = vpack.c.b16 %v728, %v727
      %v734 = vpack.c.b16 %v730, %v729
      %735 = vrot.lane.b32.xlu0 %v731, 8
      %v736 = vpop.permute.xlu0 %735
      %737 = vrot.lane.b32.xlu0 %v732, 8
      %v738 = vpop.permute.xlu0 %737
      %739 = vrot.lane.b32.xlu0 %v733, 8
      %v740 = vpop.permute.xlu0 %739
      %741 = vrot.lane.b32.xlu0 %v734, 8
      %v742 = vpop.permute.xlu0 %741
      %v751 = vunpack.c.l.b16 %v393
      %v752 = vunpack.c.l.b16 %v394
      %v753 = vunpack.c.l.b16 %v395
      %v754 = vunpack.c.l.b16 %v396
      %v755 = vunpack.c.l.b16 %v397
      %v756 = vunpack.c.l.b16 %v398
      %v757 = vunpack.c.l.b16 %v399
      %v758 = vunpack.c.l.b16 %v400
      %v759 = vpack.c.b16 %v752, %v751
      %v760 = vpack.c.b16 %v754, %v753
      %v761 = vpack.c.b16 %v756, %v755
      %v762 = vpack.c.b16 %v758, %v757
      %763 = vrot.lane.b32.xlu0 %v759, 12
      %v764 = vpop.permute.xlu0 %763
      %765 = vrot.lane.b32.xlu0 %v760, 12
      %v766 = vpop.permute.xlu0 %765
      %767 = vrot.lane.b32.xlu0 %v761, 12
      %v768 = vpop.permute.xlu0 %767
      %769 = vrot.lane.b32.xlu0 %v762, 12
      %v770 = vpop.permute.xlu0 %769
      %v779 = vunpack.c.l.b16 %v404
      %v780 = vunpack.c.l.b16 %v405
      %v781 = vunpack.c.l.b16 %v406
      %v782 = vunpack.c.l.b16 %v407
      %v783 = vunpack.c.l.b16 %v408
      %v784 = vunpack.c.l.b16 %v409
      %v785 = vunpack.c.l.b16 %v410
      %v786 = vunpack.c.l.b16 %v411
      %v787 = vpack.c.b16 %v780, %v779
      %v788 = vpack.c.b16 %v782, %v781
      %v789 = vpack.c.b16 %v784, %v783
      %v790 = vpack.c.b16 %v786, %v785
      %791 = vrot.lane.b32.xlu0 %v787, 16
      %v792 = vpop.permute.xlu0 %791
      %793 = vrot.lane.b32.xlu0 %v788, 16
      %v794 = vpop.permute.xlu0 %793
      %795 = vrot.lane.b32.xlu0 %v789, 16
      %v796 = vpop.permute.xlu0 %795
      %797 = vrot.lane.b32.xlu0 %v790, 16
      %v798 = vpop.permute.xlu0 %797
      %v799 = vunpack.c.l.b16 %v433
      %v800 = vunpack.c.l.b16 %v447
      %v801 = vunpack.c.l.b16 %v461
      %v802 = vunpack.c.l.b16 %v475
      %v803 = vunpack.c.l.b16 %v489
      %v804 = vunpack.c.l.b16 %v503
      %v805 = vunpack.c.l.b16 %v517
      %v806 = vunpack.c.l.b16 %v531
      %v807 = vpack.c.b16 %v800, %v799
      %v808 = vpack.c.b16 %v802, %v801
      %v809 = vpack.c.b16 %v804, %v803
      %v810 = vpack.c.b16 %v806, %v805
      %811 = vrot.lane.b32.xlu0 %v807, 20
      %v812 = vpop.permute.xlu0 %811
      %813 = vrot.lane.b32.xlu0 %v808, 20
      %v814 = vpop.permute.xlu0 %813
      %815 = vrot.lane.b32.xlu0 %v809, 20
      %v816 = vpop.permute.xlu0 %815
      %817 = vrot.lane.b32.xlu0 %v810, 20
      %v818 = vpop.permute.xlu0 %817
      %v827 = vunpack.c.l.b16 %v536
      %v828 = vunpack.c.l.b16 %v537
      %v829 = vunpack.c.l.b16 %v538
      %v830 = vunpack.c.l.b16 %v539
      %v831 = vunpack.c.l.b16 %v540
      %v832 = vunpack.c.l.b16 %v541
      %v833 = vunpack.c.l.b16 %v542
      %v834 = vunpack.c.l.b16 %v543
      %v835 = vpack.c.b16 %v828, %v827
      %v836 = vpack.c.b16 %v830, %v829
      %v837 = vpack.c.b16 %v832, %v831
      %v838 = vpack.c.b16 %v834, %v833
      %839 = vrot.lane.b32.xlu0 %v835, 24
      %v840 = vpop.permute.xlu0 %839
      %841 = vrot.lane.b32.xlu0 %v836, 24
      %v842 = vpop.permute.xlu0 %841
      %843 = vrot.lane.b32.xlu0 %v837, 24
      %v844 = vpop.permute.xlu0 %843
      %845 = vrot.lane.b32.xlu0 %v838, 24
      %v846 = vpop.permute.xlu0 %845
      %v855 = vunpack.c.l.b16 %v547
      %v856 = vunpack.c.l.b16 %v548
      %v857 = vunpack.c.l.b16 %v549
      %v858 = vunpack.c.l.b16 %v550
      %v859 = vunpack.c.l.b16 %v551
      %v860 = vunpack.c.l.b16 %v552
      %v861 = vunpack.c.l.b16 %v553
      %v862 = vunpack.c.l.b16 %v554
      %v863 = vpack.c.b16 %v856, %v855
      %v864 = vpack.c.b16 %v858, %v857
      %v865 = vpack.c.b16 %v860, %v859
      %v866 = vpack.c.b16 %v862, %v861
      %867 = vrot.lane.b32.xlu0 %v863, 28
      %v868 = vpop.permute.xlu0 %867
      %869 = vrot.lane.b32.xlu0 %v864, 28
      %v870 = vpop.permute.xlu0 %869
      %871 = vrot.lane.b32.xlu0 %v865, 28
      %v872 = vpop.permute.xlu0 %871
      %873 = vrot.lane.b32.xlu0 %v866, 28
      %v874 = vpop.permute.xlu0 %873
      %v875 = vunpack.c.l.b16 %v576
      %v876 = vunpack.c.l.b16 %v590
      %v877 = vunpack.c.l.b16 %v604
      %v878 = vunpack.c.l.b16 %v618
      %v879 = vunpack.c.l.b16 %v632
      %v880 = vunpack.c.l.b16 %v646
      %v881 = vunpack.c.l.b16 %v660
      %v882 = vunpack.c.l.b16 %v674
      %v883 = vpack.c.b16 %v876, %v875
      %v884 = vpack.c.b16 %v878, %v877
      %v885 = vpack.c.b16 %v880, %v879
      %v886 = vpack.c.b16 %v882, %v881
      %887 = vrot.lane.b32.xlu0 %v883, 32
      %v888 = vpop.permute.xlu0 %887
      %889 = vrot.lane.b32.xlu0 %v884, 32
      %v890 = vpop.permute.xlu0 %889
      %891 = vrot.lane.b32.xlu0 %v885, 32
      %v892 = vpop.permute.xlu0 %891
      %893 = vrot.lane.b32.xlu0 %v886, 32
      %v894 = vpop.permute.xlu0 %893
      %vm895 = vcmask 31744
      %v898 = vsel %vm895, %v691, %v716
      %v901 = vsel %vm895, %v692, %v718
      %v904 = vsel %vm895, %v693, %v720
      %v907 = vsel %vm895, %v694, %v722
      %vm908 = vcmask 64512
      %v910 = vsel %vm908, %v898, %v736
      %v912 = vsel %vm908, %v901, %v738
      %v914 = vsel %vm908, %v904, %v740
      %v916 = vsel %vm908, %v907, %v742
      %vm917 = vcmask 97280
      %v919 = vsel %vm917, %v910, %v764
      %v921 = vsel %vm917, %v912, %v766
      %v923 = vsel %vm917, %v914, %v768
      %v925 = vsel %vm917, %v916, %v770
      %vm926 = vcmask 130048
      %v928 = vsel %vm926, %v919, %v792
      %v930 = vsel %vm926, %v921, %v794
      %v932 = vsel %vm926, %v923, %v796
      %v934 = vsel %vm926, %v925, %v798
      %vm935 = vcmask 162816
      %v937 = vsel %vm935, %v928, %v812
      %v939 = vsel %vm935, %v930, %v814
      %v941 = vsel %vm935, %v932, %v816
      %v943 = vsel %vm935, %v934, %v818
      %vm944 = vcmask 195584
      %v946 = vsel %vm944, %v937, %v840
      %v948 = vsel %vm944, %v939, %v842
      %v950 = vsel %vm944, %v941, %v844
      %v952 = vsel %vm944, %v943, %v846
      %vm953 = vcmask 228352
      %v955 = vsel %vm953, %v946, %v868
      %v957 = vsel %vm953, %v948, %v870
      %v959 = vsel %vm953, %v950, %v872
      %v961 = vsel %vm953, %v952, %v874
      %vm962 = vcmask 261120
      %v964 = vsel %vm962, %v955, %v888
      %v966 = vsel %vm962, %v957, %v890
      %v968 = vsel %vm962, %v959, %v892
      %v970 = vsel %vm962, %v961, %v894
      %v971 = vld [vmem:[%s1] sm:$0xf]
      %v972 = vld [vmem:[%s1 + $0x4] sm:$0xf]
      %v973 = vld [vmem:[%s1 + $0x8] sm:$0xf]
      %v974 = vld [vmem:[%s1 + $0xc] sm:$0xf]
      %v975 = vld [vmem:[%s1 + $0x10] sm:$0x3]
      %v976 = vld [vmem:[%s2] sm:$0x1]
      %v978 = vlaneseq
      %v979 = vshrl.u32 %v978, 7
      %v980 = vsub.s32 0, %v979
      %v981 = vrot.slane %v976, %v980
      %v988 = vunpack.c.l.b16 %v971
      %v989 = vunpack.c.l.b16 %v972
      %v990 = vunpack.c.l.b16 %v973
      %v991 = vunpack.c.l.b16 %v974
      %v992 = vunpack.c.l.b16 %v975
      %v993 = vpack.c.b16 %v989, %v988
      %v994 = vpack.c.b16 %v991, %v990
      %v995 = vpack.c.b16 %v992, %v992
      %vm998 = vcmask 293888
      %v999 = vsel %vm998, %v964, 0
      %v1001 = vsel %vm998, %v966, 0
      %v1003 = vsel %vm998, %v968, 0
      %v1005 = vsel %vm998, %v970, 0
      %vm1007 = vcmask 1041408
      %v1009 = vsel %vm1007, %v995, 0
      %1011 = vmatprep.subr.bf16.mxu0 0
      %1012 = vmatpush1.bf16.msra.mxu0 0
      %1013 = vmatprep.subr.bf16.mxu0 0
      %1014 = vmatpush1.bf16.msra.mxu0 0
      %1015 = vmatprep.subr.bf16.mxu0 0
      %1016 = vmatpush1.bf16.msra.mxu0 0
      %1017 = vmatprep.subr.bf16.mxu0 0
      %1018 = vmatpush1.bf16.msra.mxu0 0
      %1019 = vmatprep.subr.bf16.mxu0 0
      %1020 = vmatpush1.bf16.msra.mxu0 0
      %1021 = vmatprep.subr.bf16.mxu0 0
      %1022 = vmatpush1.bf16.msra.mxu0 %v1009
      %1023 = vmatprep.subr.bf16.mxu0 0
      %1024 = vmatpush1.bf16.msra.mxu0 %v994
      %1025 = vmatprep.subr.bf16.mxu0 0
      %1026 = vmatpush1.bf16.msra.mxu0 %v993
      %1027 = vmatprep.subr.bf16.mxu0 0
      %1028 = vmatpush2.bf16.msra.mxu0 0
      %1029 = vmatprep.subr.bf16.mxu0 0
      %1030 = vmatpush2.bf16.msra.mxu0 0
      %1031 = vmatprep.subr.bf16.mxu0 0
      %1032 = vmatpush2.bf16.msra.mxu0 0
      %1033 = vmatprep.subr.bf16.mxu0 0
      %1034 = vmatpush2.bf16.msra.mxu0 0
      %1035 = vmatprep.subr.bf16.mxu0 0
      %1036 = vmatpush2.bf16.msra.mxu0 0
      %1037 = vmatprep.subr.bf16.mxu0 0
      %1038 = vmatpush2.bf16.msra.mxu0 0
      %1039 = vmatprep.subr.bf16.mxu0 0
      %1040 = vmatpush2.bf16.msra.mxu0 0
      %1041 = vmatprep.subr.bf16.mxu0 0
      %1042 = vmatpush2.bf16.msra.mxu0 0
      %1043 = vmatprep.mubr.bf16.mxu0 0
      %1044 = vmatmul.mubr.bf16.gmra.mxu0 %v999
      %v1045 = vpop.f32.mrf.mxu0
      %v1046 = vadd.f32 %v981, %v1045
      %v1047 = vpop.f32.mrf.mxu0
      %v1048 = vpop.f32.mrf.mxu0
      %v1049 = vadd.f32 %v981, %v1048
      %v1050 = vpop.f32.mrf.mxu0
      %1051 = vmatprep.mubr.bf16.mxu0 0
      %1052 = vmatmul.mubr.bf16.gmra.mxu0 %v1001
      %v1053 = vpop.f32.mrf.mxu0
      %v1054 = vadd.f32 %v981, %v1053
      %v1055 = vpop.f32.mrf.mxu0
      %v1056 = vpop.f32.mrf.mxu0
      %v1057 = vadd.f32 %v981, %v1056
      %v1058 = vpop.f32.mrf.mxu0
      %1059 = vmatprep.mubr.bf16.mxu0 0
      %1060 = vmatmul.mubr.bf16.gmra.mxu0 %v1003
      %v1061 = vpop.f32.mrf.mxu0
      %v1062 = vadd.f32 %v981, %v1061
      %v1063 = vpop.f32.mrf.mxu0
      %v1064 = vpop.f32.mrf.mxu0
      %v1065 = vadd.f32 %v981, %v1064
      %v1066 = vpop.f32.mrf.mxu0
      %1067 = vmatprep.mubr.bf16.mxu0 0
      %1068 = vmatmul.mubr.bf16.gmra.mxu0 %v1005
      %v1069 = vpop.f32.mrf.mxu0
      %v1070 = vadd.f32 %v981, %v1069
      %v1071 = vpop.f32.mrf.mxu0
      %v1072 = vpop.f32.mrf.mxu0
      %v1073 = vadd.f32 %v981, %v1072
      %v1074 = vpop.f32.mrf.mxu0
      %1075 = vdwg.mxu0
      %v1076 = vmax.f32 %v1046, 0.0
      %v1077 = vmax.f32 %v1049, 0.0
      %v1078 = vmax.f32 %v1054, 0.0
      %v1079 = vmax.f32 %v1057, 0.0
      %v1080 = vmax.f32 %v1062, 0.0
      %v1081 = vmax.f32 %v1065, 0.0
      %v1082 = vmax.f32 %v1070, 0.0
      %v1083 = vmax.f32 %v1073, 0.0
      %v1084 = vpack.c.bf16 %v1077, %v1076
      %v1085 = vpack.c.bf16 %v1079, %v1078
      %v1086 = vpack.c.bf16 %v1081, %v1080
      %v1087 = vpack.c.bf16 %v1083, %v1082
      %v1088 = vld [vmem:[%s3] sm:$0xf]
      %v1089 = vld [vmem:[%s3 + $0x4] sm:$0xf]
      %v1090 = vld [vmem:[%s3 + $0x8] sm:$0xf]
      %v1091 = vld [vmem:[%s3 + $0xc] sm:$0xf]
      %v1092 = vld [vmem:[%s3 + $0x10] sm:$0xf]
      %v1093 = vld [vmem:[%s3 + $0x14] sm:$0xf]
      %v1094 = vld [vmem:[%s3 + $0x18] sm:$0xf]
      %v1095 = vld [vmem:[%s3 + $0x1c] sm:$0xf]
      %v1096 = vld [vmem:[%s3 + $0x20] sm:$0xf]
      %v1097 = vld [vmem:[%s3 + $0x24] sm:$0xf]
      %v1098 = vld [vmem:[%s3 + $0x28] sm:$0xf]
      %v1099 = vld [vmem:[%s3 + $0x2c] sm:$0xf]
      %v1100 = vld [vmem:[%s3 + $0x30] sm:$0xf]
      %v1101 = vld [vmem:[%s3 + $0x34] sm:$0xf]
      %v1102 = vld [vmem:[%s3 + $0x38] sm:$0xf]
      %v1103 = vld [vmem:[%s3 + $0x3c] sm:$0xf]
      %v1104 = vld [vmem:[%s4] sm:$0x1]
      %v1106 = vlaneseq
      %v1107 = vshrl.u32 %v1106, 7
      %v1108 = vsub.s32 0, %v1107
      %v1109 = vrot.slane %v1104, %v1108
      %v1127 = vunpack.c.l.b16 %v1088
      %v1128 = vunpack.c.l.b16 %v1089
      %v1129 = vunpack.c.l.b16 %v1090
      %v1130 = vunpack.c.l.b16 %v1091
      %v1131 = vunpack.c.l.b16 %v1092
      %v1132 = vunpack.c.l.b16 %v1093
      %v1133 = vunpack.c.l.b16 %v1094
      %v1134 = vunpack.c.l.b16 %v1095
      %v1135 = vunpack.c.l.b16 %v1096
      %v1136 = vunpack.c.l.b16 %v1097
      %v1137 = vunpack.c.l.b16 %v1098
      %v1138 = vunpack.c.l.b16 %v1099
      %v1139 = vunpack.c.l.b16 %v1100
      %v1140 = vunpack.c.l.b16 %v1101
      %v1141 = vunpack.c.l.b16 %v1102
      %v1142 = vunpack.c.l.b16 %v1103
      %v1143 = vpack.c.b16 %v1128, %v1127
      %v1144 = vpack.c.b16 %v1130, %v1129
      %v1145 = vpack.c.b16 %v1132, %v1131
      %v1146 = vpack.c.b16 %v1134, %v1133
      %v1147 = vpack.c.b16 %v1136, %v1135
      %v1148 = vpack.c.b16 %v1138, %v1137
      %v1149 = vpack.c.b16 %v1140, %v1139
      %v1150 = vpack.c.b16 %v1142, %v1141
      %1159 = vmatprep.subr.bf16.mxu0 0
      %1160 = vmatpush1.bf16.msra.mxu0 %v1150
      %1161 = vmatprep.subr.bf16.mxu0 0
      %1162 = vmatpush1.bf16.msra.mxu0 %v1149
      %1163 = vmatprep.subr.bf16.mxu0 0
      %1164 = vmatpush1.bf16.msra.mxu0 %v1148
      %1165 = vmatprep.subr.bf16.mxu0 0
      %1166 = vmatpush1.bf16.msra.mxu0 %v1147
      %1167 = vmatprep.subr.bf16.mxu0 0
      %1168 = vmatpush1.bf16.msra.mxu0 %v1146
      %1169 = vmatprep.subr.bf16.mxu0 0
      %1170 = vmatpush1.bf16.msra.mxu0 %v1145
      %1171 = vmatprep.subr.bf16.mxu0 0
      %1172 = vmatpush1.bf16.msra.mxu0 %v1144
      %1173 = vmatprep.subr.bf16.mxu0 0
      %1174 = vmatpush1.bf16.msra.mxu0 %v1143
      %1175 = vmatprep.subr.bf16.mxu0 0
      %1176 = vmatpush2.bf16.msra.mxu0 0
      %1177 = vmatprep.subr.bf16.mxu0 0
      %1178 = vmatpush2.bf16.msra.mxu0 0
      %1179 = vmatprep.subr.bf16.mxu0 0
      %1180 = vmatpush2.bf16.msra.mxu0 0
      %1181 = vmatprep.subr.bf16.mxu0 0
      %1182 = vmatpush2.bf16.msra.mxu0 0
      %1183 = vmatprep.subr.bf16.mxu0 0
      %1184 = vmatpush2.bf16.msra.mxu0 0
      %1185 = vmatprep.subr.bf16.mxu0 0
      %1186 = vmatpush2.bf16.msra.mxu0 0
      %1187 = vmatprep.subr.bf16.mxu0 0
      %1188 = vmatpush2.bf16.msra.mxu0 0
      %1189 = vmatprep.subr.bf16.mxu0 0
      %1190 = vmatpush2.bf16.msra.mxu0 0
      %1191 = vmatprep.mubr.bf16.mxu0 0
      %1192 = vmatmul.mubr.bf16.gmra.mxu0 %v1084
      %v1193 = vpop.f32.mrf.mxu0
      %v1194 = vadd.f32 %v1109, %v1193
      %v1195 = vpop.f32.mrf.mxu0
      %v1196 = vpop.f32.mrf.mxu0
      %v1197 = vadd.f32 %v1109, %v1196
      %v1198 = vpop.f32.mrf.mxu0
      %1199 = vmatprep.mubr.bf16.mxu0 0
      %1200 = vmatmul.mubr.bf16.gmra.mxu0 %v1085
      %v1201 = vpop.f32.mrf.mxu0
      %v1202 = vadd.f32 %v1109, %v1201
      %v1203 = vpop.f32.mrf.mxu0
      %v1204 = vpop.f32.mrf.mxu0
      %v1205 = vadd.f32 %v1109, %v1204
      %v1206 = vpop.f32.mrf.mxu0
      %1207 = vmatprep.mubr.bf16.mxu0 0
      %1208 = vmatmul.mubr.bf16.gmra.mxu0 %v1086
      %v1209 = vpop.f32.mrf.mxu0
      %v1210 = vadd.f32 %v1109, %v1209
      %v1211 = vpop.f32.mrf.mxu0
      %v1212 = vpop.f32.mrf.mxu0
      %v1213 = vadd.f32 %v1109, %v1212
      %v1214 = vpop.f32.mrf.mxu0
      %1215 = vmatprep.mubr.bf16.mxu0 0
      %1216 = vmatmul.mubr.bf16.gmra.mxu0 %v1087
      %v1217 = vpop.f32.mrf.mxu0
      %v1218 = vadd.f32 %v1109, %v1217
      %v1219 = vpop.f32.mrf.mxu0
      %v1220 = vpop.f32.mrf.mxu0
      %v1221 = vadd.f32 %v1109, %v1220
      %v1222 = vpop.f32.mrf.mxu0
      %1223 = vdwg.mxu0
      %1224 = vxpose.xlu0.b32.start [1/16] %v1194, 128
      %1225 = vxpose.xlu0.b32.cont [2/16] %v1197, 128
      %1226 = vxpose.xlu0.b32.cont [3/16] %v1202, 128
      %1227 = vxpose.xlu0.b32.cont [4/16] %v1205, 128
      %1228 = vxpose.xlu0.b32.cont [5/16] %v1210, 128
      %1229 = vxpose.xlu0.b32.cont [6/16] %v1213, 128
      %1230 = vxpose.xlu0.b32.cont [7/16] %v1218, 128
      %1231 = vxpose.xlu0.b32.cont [8/16] %v1221, 128
      %1232 = vxpose.xlu0.b32.cont [9/16] 0.0, 128
      %1233 = vxpose.xlu0.b32.cont [10/16] 0.0, 128
      %1234 = vxpose.xlu0.b32.cont [11/16] 0.0, 128
      %1235 = vxpose.xlu0.b32.cont [12/16] 0.0, 128
      %1236 = vxpose.xlu0.b32.cont [13/16] 0.0, 128
      %1237 = vxpose.xlu0.b32.cont [14/16] 0.0, 128
      %1238 = vxpose.xlu0.b32.cont [15/16] 0.0, 128
      %1239 = vxpose.xlu0.b32.end [16/16] 0.0, 128
      %v1240 = vpop.trf.xlu0
      %v1241 = vpop.trf.xlu0
      %v1242 = vpop.trf.xlu0
      %v1243 = vpop.trf.xlu0
      %v1244 = vpop.trf.xlu0
      %v1245 = vpop.trf.xlu0
      %v1246 = vpop.trf.xlu0
      %v1247 = vpop.trf.xlu0
      %v1248 = vpop.trf.xlu0
      %v1249 = vpop.trf.xlu0
      %v1250 = vpop.trf.xlu0
      %v1251 = vpop.trf.xlu0
      %v1252 = vpop.trf.xlu0
      %v1253 = vpop.trf.xlu0
      %v1254 = vpop.trf.xlu0
      %v1255 = vpop.trf.xlu0
      %vm1256 = vcmask 517120
      %1257 = vst.msk [vmem:[%s242] sm:$0x3] %vm1256, %v1240
      %p1258 = scmp.lt.s32.totalorder %s20, 1
      %s1259 = scalar_select %p1258, %s20, 1
      %p1260 = scmp.lt.s32.totalorder %s21, 0
      %s1261 = scalar_select %p1260, %s21, 0
      %s1262 = sadd.s32 %s1261, %s1259
      %s1263 = smul.addr %s1262, 2
      %s1264 = scalar_lea.vmem %s5, %s1263
      // Predicated region
      $region41: #{base_model_forward.2} parent=39 // pred_check
        %p1265 = pneg %p158
      $region42: #{base_model_forward.2} parent=39 // pred_check_branch
        %1267 = sbr.rel (%p1265) target = $region44
      $region43: #{base_model_forward.2} parent=39 // pred_region
        _
      $region44: #{base_model_forward.2} parent=39 // pred_fallthru
        _
    $region40: #{base_model_forward.2} parent=5 // pred_fallthru
      _
    %p1268 = scmp.le.s32.totalorder 2, %s11
    // Predicated region
    $region45: #{base_model_forward.2} parent=5 // pred_check
      %p1269 = pneg %p1268
    $region46: #{base_model_forward.2} parent=5 // pred_check_branch
      %1271 = sbr.rel (%p1269) target = $region48
    $region47: #{base_model_forward.2} parent=5 // pred_region
      %s1272 = ssub.s32 %s11, 2
      // Predicated region
      $region49: #{base_model_forward.2} parent=47 // pred_check
        %p1273 = pneg %p164
      $region50: #{base_model_forward.2} parent=47 // pred_check_branch
        %1275 = sbr.rel (%p1273) target = $region52
      $region51: #{base_model_forward.2} parent=47 // pred_region
        %p1276 = scmp.lt.s32.totalorder %s22, 1
        %s1277 = scalar_select %p1276, %s22, 1
        %p1278 = scmp.lt.s32.totalorder %s23, 0
        %s1279 = scalar_select %p1278, %s23, 0
        %s1280 = sadd.s32 %s1279, %s1277
        %s1281 = smul.addr %s1280, 2
        %s1282 = scalar_lea.vmem %s5, %s1281
      $region52: #{base_model_forward.2} parent=47 // pred_fallthru
        _
    $region48: #{base_model_forward.2} parent=5 // pred_fallthru
      _
  $region6: #{base_model_forward.2} parent=0 // loop_footer
    %s15 = sadd.s32 1, %s11
  $region7: #{base_model_forward.2} parent=0 // loop_footer_branch
    %10 = sbr.rel target = $region3
  $region8: #{base_model_forward.2} parent=0 // loop_exit
    _

</llo_original>
